<compile_context>
chip_gen: v7x
topology: tpu7x:2x2x1
jax: 0.10.0
libtpu: 0.0.40
codegen_flags: <defaults>
</compile_context>

<pallas_src>
import jax
import jax.numpy as jnp
from jax import lax
from jax.experimental import pallas as pl
from jax.experimental.pallas import tpu as pltpu


def _prenorm_kernel(x_ref, w_ref, b_ref, o_ref, *, eps):
    # x_ref: (1, C, TL), w_ref: (C, C) with gamma pre-folded, b_ref: (C, 1)
    x = x_ref[0].astype(jnp.float32)                     # stats in f32 (C, TL)
    mean = jnp.mean(x, axis=0, keepdims=True)            # (1, TL)
    centered = x - mean
    var = jnp.mean(centered * centered, axis=0, keepdims=True)  # unbiased=False
    inv = lax.rsqrt(var + eps)                           # EUP, effectively free
    normed = centered * inv                              # gamma folded into W
    # fct: pointwise 1x1 conv over channels == matmul on the MXU
    y = jnp.dot(w_ref[...], normed.astype(w_ref.dtype),
                preferred_element_type=jnp.float32)      # (C, TL)
    y = y + b_ref[...].astype(jnp.float32)
    o_ref[0] = y.astype(o_ref.dtype)


def _pick_tile_l(C, L, itemsize, io_budget_bytes=16 << 20):
    """Largest lane-dense L tile (<=2048) dividing L whose double-buffered
    in+out traffic fits a conservative VMEM budget (valid on v5e/v6e/v7x)."""
    if L % 128 != 0:
        return L  # full-extent block is always legal
    for cand in (2048, 1024, 512, 384, 256, 128):
        if cand <= L and L % cand == 0:
            io_bytes = 2 * 2 * C * cand * itemsize  # (in + out) x 2 buffers
            if io_bytes <= io_budget_bytes:
                return cand
    return L


def prenorm_pallas(x, gamma, w, b, *, tl=None):
    B, C, L = x.shape
    eps = 1e-5 if x.dtype == jnp.float32 else 1e-3

    # Fold the LayerNorm per-channel gamma into the 1x1-conv weight columns.
    w_scaled = (w * gamma.reshape(1, C)).astype(w.dtype)  # (C_out, C_in)
    b2d = b.reshape(C, 1)

    if tl is None:
        tl = _pick_tile_l(C, L, jnp.dtype(x.dtype).itemsize)
    assert L % tl == 0, "L tile must divide L"

    kernel = lambda xr, wr, br, orf: _prenorm_kernel(xr, wr, br, orf, eps=eps)

    return pl.pallas_call(
        kernel,
        out_shape=jax.ShapeDtypeStruct((B, C, L), x.dtype),
        grid_spec=pltpu.PrefetchScalarGridSpec(
            num_scalar_prefetch=0,
            grid=(B, L // tl),
            in_specs=[
                pl.BlockSpec((1, C, tl), lambda bi, li: (bi, 0, li)),
                pl.BlockSpec((C, C), lambda bi, li: (0, 0)),   # resident weight
                pl.BlockSpec((C, 1), lambda bi, li: (0, 0)),   # resident bias
            ],
            out_specs=pl.BlockSpec((1, C, tl), lambda bi, li: (bi, 0, li)),
        ),
        compiler_params=pltpu.CompilerParams(
            dimension_semantics=("parallel", "parallel"),
            vmem_limit_bytes=32 << 20,
        ),
    )(x, w_scaled, b2d)


def prenorm_ref(x, gamma, w, b):
    eps = 1e-5 if x.dtype == jnp.float32 else 1e-3
    xf = x.astype(jnp.float32)
    mean = jnp.mean(xf, axis=1, keepdims=True)
    var = jnp.mean((xf - mean) ** 2, axis=1, keepdims=True)
    normed = (xf - mean) * lax.rsqrt(var + eps) * gamma.astype(jnp.float32)
    y = jnp.einsum("oc,bcl->bol", w.astype(jnp.float32), normed)
    y = y + b.reshape(1, -1, 1).astype(jnp.float32)
    return y.astype(x.dtype)


if __name__ == "__main__":
    B, C, L = 2, 32, 4096   # batch=2, dim=32, seq=4096 (exercises L tiling)

    key = jax.random.PRNGKey(0)
    kx, kg, kw, kb = jax.random.split(key, 4)

    x = jax.random.normal(kx, (B, C, L), dtype=jnp.float32)
    gamma = 1.0 + 0.1 * jax.random.normal(kg, (1, C, 1), dtype=jnp.float32)
    # deterministic params for the representative fct (1x1 Conv1d dim->dim)
    w = jax.random.normal(kw, (C, C), dtype=jnp.float32) * (1.0 / jnp.sqrt(C))
    b = jax.random.normal(kb, (C,), dtype=jnp.float32) * 0.01

    out = jax.block_until_ready(prenorm_pallas(x, gamma, w, b))
    ref = prenorm_ref(x, gamma, w, b)

    assert out.shape == (B, C, L) and out.dtype == x.dtype
    assert jnp.allclose(out, ref, atol=1e-4, rtol=1e-4), "mismatch vs reference"
    print("KERNEL_OK")
</pallas_src>

<mosaic_0001>
module attributes {stable_mosaic.version = 11 : i64} {
  func.func @_lambda_(%arg0: i32, %arg1: i32, %arg2: memref<1x32x2048xf32, #tpu.memory_space<vmem>>, %arg3: memref<32x32xf32, #tpu.memory_space<vmem>>, %arg4: memref<32x1xf32, #tpu.memory_space<vmem>>, %arg5: memref<1x32x2048xf32, #tpu.memory_space<vmem>>) attributes {dimension_semantics = [#tpu.dimension_semantics<parallel>, #tpu.dimension_semantics<parallel>], iteration_bounds = array<i64: 2, 2>, scalar_prefetch = 0 : i64, scratch_operands = 0 : i64, tpu.core_type = #tpu.core_type<tc>, window_params = [{transform_indices = @transform_0, window_bounds = array<i64: 1, 32, 2048>}, {pipeline_mode = #tpu.pipeline_mode<synchronous>, transform_indices = @transform_1, window_bounds = array<i64: 32, 32>}, {pipeline_mode = #tpu.pipeline_mode<synchronous>, transform_indices = @transform_2, window_bounds = array<i64: 32, 1>}, {transform_indices = @transform_3, window_bounds = array<i64: 1, 32, 2048>}]} {
    %c0 = arith.constant 0 : index
    %c0_0 = arith.constant 0 : index
    %c0_1 = arith.constant 0 : index
    %0 = vector.load %arg2[%c0, %c0_0, %c0_1] : memref<1x32x2048xf32, #tpu.memory_space<vmem>>, vector<1x32x2048xf32>
    %1 = vector.shape_cast %0 : vector<1x32x2048xf32> to vector<32x2048xf32>
    %cst = arith.constant dense<0.000000e+00> : vector<2048xf32>
    %2 = vector.multi_reduction <add>, %1, %cst [0] : vector<32x2048xf32> to vector<2048xf32>
    %3 = vector.shape_cast %2 : vector<2048xf32> to vector<1x2048xf32>
    %cst_2 = arith.constant 3.200000e+01 : f32
    %4 = vector.broadcast %cst_2 : f32 to vector<1x2048xf32>
    %5 = arith.divf %3, %4 : vector<1x2048xf32>
    %6 = vector.broadcast %5 : vector<1x2048xf32> to vector<32x2048xf32>
    %7 = arith.subf %1, %6 : vector<32x2048xf32>
    %8 = arith.mulf %7, %7 : vector<32x2048xf32>
    %cst_3 = arith.constant dense<0.000000e+00> : vector<2048xf32>
    %9 = vector.multi_reduction <add>, %8, %cst_3 [0] : vector<32x2048xf32> to vector<2048xf32>
    %10 = vector.shape_cast %9 : vector<2048xf32> to vector<1x2048xf32>
    %cst_4 = arith.constant 3.200000e+01 : f32
    %11 = vector.broadcast %cst_4 : f32 to vector<1x2048xf32>
    %12 = arith.divf %10, %11 : vector<1x2048xf32>
    %cst_5 = arith.constant 9.99999974E-6 : f32
    %13 = vector.broadcast %cst_5 : f32 to vector<1x2048xf32>
    %14 = arith.addf %12, %13 : vector<1x2048xf32>
    %15 = math.rsqrt %14 : vector<1x2048xf32>
    %16 = vector.broadcast %15 : vector<1x2048xf32> to vector<32x2048xf32>
    %17 = arith.mulf %7, %16 : vector<32x2048xf32>
    %c0_6 = arith.constant 0 : index
    %c0_7 = arith.constant 0 : index
    %18 = vector.load %arg3[%c0_6, %c0_7] : memref<32x32xf32, #tpu.memory_space<vmem>>, vector<32x32xf32>
    %cst_8 = arith.constant dense<0.000000e+00> : vector<32x2048xf32>
    %19 = tpu.matmul %18, %17, %cst_8 {dimension_numbers = #tpu.dot_dimension_numbers<[1], [0], [0], [1], [0, 0, 1, 1], [], []>} : vector<32x32xf32>, vector<32x2048xf32>, vector<32x2048xf32> -> vector<32x2048xf32>
    %c0_9 = arith.constant 0 : index
    %c0_10 = arith.constant 0 : index
    %20 = vector.load %arg4[%c0_9, %c0_10] : memref<32x1xf32, #tpu.memory_space<vmem>>, vector<32x1xf32>
    %21 = vector.broadcast %20 : vector<32x1xf32> to vector<32x2048xf32>
    %22 = arith.addf %19, %21 : vector<32x2048xf32>
    %c0_11 = arith.constant 0 : index
    %c0_12 = arith.constant 0 : index
    %c0_13 = arith.constant 0 : index
    %23 = vector.load %arg5[%c0_11, %c0_12, %c0_13] : memref<1x32x2048xf32, #tpu.memory_space<vmem>>, vector<1x32x2048xf32>
    %24 = vector.shape_cast %23 : vector<1x32x2048xf32> to vector<32x2048xf32>
    %25 = vector.shape_cast %22 : vector<32x2048xf32> to vector<1x32x2048xf32>
    tpu.vector_store %arg5[%c0_11, %c0_12, %c0_13], %25 {strides = array<i32>} : memref<1x32x2048xf32, #tpu.memory_space<vmem>>, vector<1x32x2048xf32>,
    return
  }
  func.func @transform_0(%arg0: i32, %arg1: i32) -> (i32, i32, i32) {
    %c0_i32 = arith.constant 0 : i32
    %c0_i32_0 = arith.constant 0 : i32
    return %arg0, %c0_i32, %arg1 : i32, i32, i32
  }
  func.func @transform_1(%arg0: i32, %arg1: i32) -> (i32, i32) {
    %c0_i32 = arith.constant 0 : i32
    %c0_i32_0 = arith.constant 0 : i32
    %c0_i32_1 = arith.constant 0 : i32
    return %c0_i32, %c0_i32_0 : i32, i32
  }
  func.func @transform_2(%arg0: i32, %arg1: i32) -> (i32, i32) {
    %c0_i32 = arith.constant 0 : i32
    %c0_i32_0 = arith.constant 0 : i32
    %c0_i32_1 = arith.constant 0 : i32
    return %c0_i32, %c0_i32_0 : i32, i32
  }
  func.func @transform_3(%arg0: i32, %arg1: i32) -> (i32, i32, i32) {
    %c0_i32 = arith.constant 0 : i32
    %c0_i32_0 = arith.constant 0 : i32
    return %arg0, %c0_i32, %arg1 : i32, i32, i32
  }
}

</mosaic_0001>

<llo_original>
// kernel: tpu_custom_call.1
$region0: #{tpu_custom_call.1}
  #allocation0 [shape = 'u32[]', space=smem, size = 0x4, offset = 0x4, fixed_abs, tag = 'smem constant byte address 0x4 - core index']
  #allocation1 [shape = 'u32[144,128]{1,0:T(1,128)}', space=vmem, size = 0x12000, scoped, tag = 'internal scratch']
  %s0 = inlined_call_operand.hbm [shape: f32[2,32,4096], index: 0, kind: input, shape index: {}]
  %s1 = inlined_call_operand.vmem [shape: f32[32,32], index: 1, kind: input, shape index: {}]
  %s2 = inlined_call_operand.vmem [shape: f32[32,1], index: 2, kind: input, shape index: {}]
  %s3 = inlined_call_operand.hbm [shape: f32[2,32,4096], index: 3, kind: output, shape index: {}]
  %s4 = sld [smem:[#allocation0]]
  $region49: #{tpu_custom_call.1} parent=0
    _
  %s6 = ssub.s32 1, %s4
  %s7 = scalar_select 0, %s6, %s4
  $region1: #{tpu_custom_call.1} parent=0
    #allocation2 [shape = 'u8[524288]{0}', space=vmem, size = 0x80000, scoped, tag = 'input window, operand 0']
    #allocation3 [shape = 's32[2]{0}', space=sflag, size = 0x8, scoped, tag = 'scoped memory for tpu_custom_call.1']
    #allocation4 [shape = 's32[2]{0}', space=sflag, size = 0x8, scoped, tag = 'scoped memory for tpu_custom_call.1']
    #allocation5 [shape = 'u8[524288]{0}', space=vmem, size = 0x80000, scoped, tag = 'output window, operand 0']
    %8 = vsyncpa [#allocation3], 0
    %s9 = scalar_lea.sflag [#allocation3], 1
    %10 = vsyncpa %s9, 0
    %11 = vsyncpa [#allocation4], 0
    %s12 = scalar_lea.sflag [#allocation4], 1
    %13 = vsyncpa %s12, 0
    loop: start=0, step=1, limit=6
    $region2: #{tpu_custom_call.1} parent=1 // loop_pre_header
      _
    $region3: #{tpu_custom_call.1} parent=1 // loop_header
      %s15 = sphi 0, %s19
      %p16 = scmp.ge.s32.totalorder %s15, 6
      %s22 = sphi 0, %s34
      %s23 = sphi 0, %s30
      %s24 = sphi 0, %s22
      %s25 = sphi 0, %s23
      %s26 = sphi 0, %s24
      %s27 = sphi 0, %s25
      %s39 = sphi 0, %s41
      %s42 = sphi 0, %s39
      %s43 = sphi 0, %s42
      %s59 = sphi 0, %s43
      %s63 = sphi 0, %s63
      %s65 = sphi 0, %s63
      %s66 = sphi 0, %s65
      %s80 = sphi 0, %s66
      %s84 = sphi 0, %s84
      %s86 = sphi 0, %s84
      %s87 = sphi 0, %s86
      %s101 = sphi 0, %s87
      %s109 = sphi 0, %s111
      %s112 = sphi 0, %s109
      %s113 = sphi 0, %s112
      %s129 = sphi 0, %s113
    $region4: #{tpu_custom_call.1} parent=1 // loop_header_branch
      %18 = sbr.rel (%p16) target = $region8
    $region5: #{tpu_custom_call.1} parent=1 // loop_body
      %s20 = ssub.s32 %s15, 1
      %s21 = ssub.s32 %s15, 2
      %s28 = sadd.s32 1, %s23
      %p29 = scmp.ge.s32.totalorder %s28, 2
      %s30 = scalar_select %p29, 0, %s28
      %s31 = sadd.s32 1, %s22
      %s32 = scalar_select %p29, %s31, %s22
      %p33 = scmp.ge.s32.totalorder %s32, 2
      %s34 = scalar_select %p33, 0, %s32
      %s35 = ssub.s32 %s22, %s34
      %s36 = ssub.s32 %s23, %s30
      %s37 = sor.u32 %s35, %s36
      %p38 = scmp.eq.s32.totalorder %s37, 0
      %s40 = sadd.s32 %s39, 1
      %s41 = scalar_select %p38, %s39, %s40
      %p44 = pneg %p38
      %p45 = scmp.eq.s32.totalorder %s15, 3
      %p46 = por %p44, %p45
      %p47 = scmp.ne.s32.totalorder %s39, %s42
      %p48 = scmp.eq.s32.totalorder %s15, 0
      %p49 = por %p47, %p48
      %p50 = scmp.ne.s32.totalorder %s39, %s42
      %p51 = scmp.eq.s32.totalorder %s20, 3
      %p52 = por %p50, %p51
      %p53 = scmp.ne.s32.totalorder %s42, %s43
      %p54 = scmp.eq.s32.totalorder %s20, 0
      %p55 = por %p53, %p54
      %p56 = scmp.ne.s32.totalorder %s42, %s43
      %p57 = scmp.eq.s32.totalorder %s21, 3
      %p58 = por %p56, %p57
      %p60 = scmp.ne.s32.totalorder %s43, %s59
      %p61 = scmp.eq.s32.totalorder %s21, 0
      %p62 = por %p60, %p61
      %s64 = sadd.s32 %s63, 1
      %p67 = scmp.eq.s32.totalorder %s15, 3
      %p68 = scmp.ne.s32.totalorder %s63, %s65
      %p69 = scmp.eq.s32.totalorder %s15, 0
      %p70 = por %p68, %p69
      %p71 = scmp.ne.s32.totalorder %s63, %s65
      %p72 = scmp.eq.s32.totalorder %s20, 3
      %p73 = por %p71, %p72
      %p74 = scmp.ne.s32.totalorder %s65, %s66
      %p75 = scmp.eq.s32.totalorder %s20, 0
      %p76 = por %p74, %p75
      %p77 = scmp.ne.s32.totalorder %s65, %s66
      %p78 = scmp.eq.s32.totalorder %s21, 3
      %p79 = por %p77, %p78
      %p81 = scmp.ne.s32.totalorder %s66, %s80
      %p82 = scmp.eq.s32.totalorder %s21, 0
      %p83 = por %p81, %p82
      %s85 = sadd.s32 %s84, 1
      %p88 = scmp.eq.s32.totalorder %s15, 3
      %p89 = scmp.ne.s32.totalorder %s84, %s86
      %p90 = scmp.eq.s32.totalorder %s15, 0
      %p91 = por %p89, %p90
      %p92 = scmp.ne.s32.totalorder %s84, %s86
      %p93 = scmp.eq.s32.totalorder %s20, 3
      %p94 = por %p92, %p93
      %p95 = scmp.ne.s32.totalorder %s86, %s87
      %p96 = scmp.eq.s32.totalorder %s20, 0
      %p97 = por %p95, %p96
      %p98 = scmp.ne.s32.totalorder %s86, %s87
      %p99 = scmp.eq.s32.totalorder %s21, 3
      %p100 = por %p98, %p99
      %p102 = scmp.ne.s32.totalorder %s87, %s101
      %p103 = scmp.eq.s32.totalorder %s21, 0
      %p104 = por %p102, %p103
      %s105 = ssub.s32 %s22, %s34
      %s106 = ssub.s32 %s23, %s30
      %s107 = sor.u32 %s105, %s106
      %p108 = scmp.eq.s32.totalorder %s107, 0
      %s110 = sadd.s32 %s109, 1
      %s111 = scalar_select %p108, %s109, %s110
      %p114 = pneg %p108
      %p115 = scmp.eq.s32.totalorder %s15, 3
      %p116 = por %p114, %p115
      %p117 = scmp.ne.s32.totalorder %s109, %s112
      %p118 = scmp.eq.s32.totalorder %s15, 0
      %p119 = por %p117, %p118
      %p120 = scmp.ne.s32.totalorder %s109, %s112
      %p121 = scmp.eq.s32.totalorder %s20, 3
      %p122 = por %p120, %p121
      %p123 = scmp.ne.s32.totalorder %s112, %s113
      %p124 = scmp.eq.s32.totalorder %s20, 0
      %p125 = por %p123, %p124
      %p126 = scmp.ne.s32.totalorder %s112, %s113
      %p127 = scmp.eq.s32.totalorder %s21, 3
      %p128 = por %p126, %p127
      %p130 = scmp.ne.s32.totalorder %s113, %s129
      %p131 = scmp.eq.s32.totalorder %s21, 0
      %p132 = por %p130, %p131
      %p133 = scmp.le.s32.totalorder 1, %s15
      %p134 = scmp.lt.s32.totalorder %s15, 5
      %p135 = pnand %p133, %p134
      %p136 = pneg %p135
      // Predicated region
      $region9: #{tpu_custom_call.1} parent=5 // pred_check
        _
      $region10: #{tpu_custom_call.1} parent=5 // pred_check_branch
        %138 = sbr.rel (%p135) target = $region12
      $region11: #{tpu_custom_call.1} parent=5 // pred_region
        %s139 = ssub.s32 %s15, 1
        // Predicated region
        $region13: #{tpu_custom_call.1} parent=11 // pred_check
          %p140 = pneg %p76
        $region14: #{tpu_custom_call.1} parent=11 // pred_check_branch
          %142 = sbr.rel (%p140) target = $region16
        $region15: #{tpu_custom_call.1} parent=11 // pred_region
          _
        $region16: #{tpu_custom_call.1} parent=11 // pred_fallthru
          _
        // Predicated region
        $region17: #{tpu_custom_call.1} parent=11 // pred_check
          %p143 = pneg %p97
        $region18: #{tpu_custom_call.1} parent=11 // pred_check_branch
          %145 = sbr.rel (%p143) target = $region20
        $region19: #{tpu_custom_call.1} parent=11 // pred_region
          _
        $region20: #{tpu_custom_call.1} parent=11 // pred_fallthru
          _
      $region12: #{tpu_custom_call.1} parent=5 // pred_fallthru
        _
      %p146 = scmp.lt.s32.totalorder %s15, 4
      // Predicated region
      $region21: #{tpu_custom_call.1} parent=5 // pred_check
        %p147 = pneg %p146
      $region22: #{tpu_custom_call.1} parent=5 // pred_check_branch
        %149 = sbr.rel (%p147) target = $region24
      $region23: #{tpu_custom_call.1} parent=5 // pred_region
        // Predicated region
        $region25: #{tpu_custom_call.1} parent=23 // pred_check
          %p150 = pneg %p49
        $region26: #{tpu_custom_call.1} parent=23 // pred_check_branch
          %152 = sbr.rel (%p150) target = $region28
        $region27: #{tpu_custom_call.1} parent=23 // pred_region
          %s153 = sand.u32 %s39, 1
          %s154 = scalar_lea.sflag [#allocation3], %s153
          %s155 = sand.u32 %s39, 1
          %s156 = smul.addr %s155, 512
          %s157 = scalar_lea.vmem [#allocation2], %s156
          %s158 = smul.u32 16, %s23
          %s160 = ssub.s32 8192, 8192
          %161 = vsyncadd %s154, %s160
          %s162 = smul.addr %s22, 128
          %s163 = sadd.s32 %s158, %s162
          %s164 = smul.addr %s163, 128
          %s165 = scalar_lea.hbm %s0, %s164
          %s166 = sshll.u32 %s157, 4
          %s167 = int_to_ptr.vmem [resolvable:$true] %s166
          %172 = dma.hbm_to_vmem [thread:$0]  %s165, 8192, %s167, %s154, 4096, 2048, 128
        $region28: #{tpu_custom_call.1} parent=23 // pred_fallthru
          _
      $region24: #{tpu_custom_call.1} parent=5 // pred_fallthru
        _
      %p173 = scmp.le.s32.totalorder 1, %s15
      %p174 = scmp.lt.s32.totalorder %s15, 5
      %p175 = pnand %p173, %p174
      %p176 = pneg %p175
      // Predicated region
      $region29: #{tpu_custom_call.1} parent=5 // pred_check
        _
      $region30: #{tpu_custom_call.1} parent=5 // pred_check_branch
        %178 = sbr.rel (%p175) target = $region32
      $region31: #{tpu_custom_call.1} parent=5 // pred_region
        %s179 = ssub.s32 %s15, 1
        %s180 = sand.u32 %s42, 1
        %s181 = scalar_lea.sflag [#allocation3], %s180
        %s182 = sand.u32 %s42, 1
        %s183 = smul.addr %s182, 512
        %s184 = scalar_lea.vmem [#allocation2], %s183
        // Predicated region
        $region33: #{tpu_custom_call.1} parent=31 // pred_check
          %p185 = pneg %p55
        $region34: #{tpu_custom_call.1} parent=31 // pred_check_branch
          %187 = sbr.rel (%p185) target = $region36
        $region35: #{tpu_custom_call.1} parent=31 // pred_region
          %188 = dma.done %s181, 8192
        $region36: #{tpu_custom_call.1} parent=31 // pred_fallthru
          _
        %s189 = sand.u32 %s42, 1
        %s190 = scalar_lea.sflag [#allocation3], %s189
        %s191 = sand.u32 %s42, 1
        %s192 = smul.addr %s191, 512
        %s193 = scalar_lea.vmem [#allocation2], %s192
        %p194 = pneg %p55
        %p195 = pneg %p52
        %p196 = pneg %p76
        %p197 = pneg %p73
        %p198 = pneg %p97
        %p199 = pneg %p94
        %p200 = pneg %p125
        %p201 = pneg %p122
        %s202 = sand.u32 %s112, 1
        %s203 = scalar_lea.sflag [#allocation4], %s202
        %s204 = sand.u32 %s112, 1
        %s205 = smul.addr %s204, 512
        %s206 = scalar_lea.vmem [#allocation5], %s205
        %s207 = smul.u32 16, %s25
        %s208 = smul.u32 16, %s25
        %v209 = vld [vmem:[%s184] sm:$0xff]
        %v210 = vld [vmem:[%s184 + $0x8] sm:$0xff]
        %v211 = vld [vmem:[%s184 + $0x10] sm:$0xff]
        %v212 = vld [vmem:[%s184 + $0x18] sm:$0xff]
        %v213 = vld [vmem:[%s184 + $0x20] sm:$0xff]
        %v214 = vld [vmem:[%s184 + $0x28] sm:$0xff]
        %v215 = vld [vmem:[%s184 + $0x30] sm:$0xff]
        %v216 = vld [vmem:[%s184 + $0x38] sm:$0xff]
        %v217 = vld [vmem:[%s184 + $0x40] sm:$0xff]
        %v218 = vld [vmem:[%s184 + $0x48] sm:$0xff]
        %v219 = vld [vmem:[%s184 + $0x50] sm:$0xff]
        %v220 = vld [vmem:[%s184 + $0x58] sm:$0xff]
        %v221 = vld [vmem:[%s184 + $0x60] sm:$0xff]
        %v222 = vld [vmem:[%s184 + $0x68] sm:$0xff]
        %v223 = vld [vmem:[%s184 + $0x70] sm:$0xff]
        %v224 = vld [vmem:[%s184 + $0x78] sm:$0xff]
        %v225 = vld [vmem:[%s184 + $0x80] sm:$0xff]
        %v226 = vld [vmem:[%s184 + $0x88] sm:$0xff]
        %v227 = vld [vmem:[%s184 + $0x90] sm:$0xff]
        %v228 = vld [vmem:[%s184 + $0x98] sm:$0xff]
        %v229 = vld [vmem:[%s184 + $0xa0] sm:$0xff]
        %v230 = vld [vmem:[%s184 + $0xa8] sm:$0xff]
        %v231 = vld [vmem:[%s184 + $0xb0] sm:$0xff]
        %v232 = vld [vmem:[%s184 + $0xb8] sm:$0xff]
        %v233 = vld [vmem:[%s184 + $0xc0] sm:$0xff]
        %v234 = vld [vmem:[%s184 + $0xc8] sm:$0xff]
        %v235 = vld [vmem:[%s184 + $0xd0] sm:$0xff]
        %v236 = vld [vmem:[%s184 + $0xd8] sm:$0xff]
        %v237 = vld [vmem:[%s184 + $0xe0] sm:$0xff]
        %v238 = vld [vmem:[%s184 + $0xe8] sm:$0xff]
        %v239 = vld [vmem:[%s184 + $0xf0] sm:$0xff]
        %v240 = vld [vmem:[%s184 + $0xf8] sm:$0xff]
        %v241 = vld [vmem:[%s184 + $0x100] sm:$0xff]
        %v242 = vld [vmem:[%s184 + $0x108] sm:$0xff]
        %v243 = vld [vmem:[%s184 + $0x110] sm:$0xff]
        %v244 = vld [vmem:[%s184 + $0x118] sm:$0xff]
        %v245 = vld [vmem:[%s184 + $0x120] sm:$0xff]
        %v246 = vld [vmem:[%s184 + $0x128] sm:$0xff]
        %v247 = vld [vmem:[%s184 + $0x130] sm:$0xff]
        %v248 = vld [vmem:[%s184 + $0x138] sm:$0xff]
        %v249 = vld [vmem:[%s184 + $0x140] sm:$0xff]
        %v250 = vld [vmem:[%s184 + $0x148] sm:$0xff]
        %v251 = vld [vmem:[%s184 + $0x150] sm:$0xff]
        %v252 = vld [vmem:[%s184 + $0x158] sm:$0xff]
        %v253 = vld [vmem:[%s184 + $0x160] sm:$0xff]
        %v254 = vld [vmem:[%s184 + $0x168] sm:$0xff]
        %v255 = vld [vmem:[%s184 + $0x170] sm:$0xff]
        %v256 = vld [vmem:[%s184 + $0x178] sm:$0xff]
        %v257 = vld [vmem:[%s184 + $0x180] sm:$0xff]
        %v258 = vld [vmem:[%s184 + $0x188] sm:$0xff]
        %v259 = vld [vmem:[%s184 + $0x190] sm:$0xff]
        %v260 = vld [vmem:[%s184 + $0x198] sm:$0xff]
        %v261 = vld [vmem:[%s184 + $0x1a0] sm:$0xff]
        %v262 = vld [vmem:[%s184 + $0x1a8] sm:$0xff]
        %v263 = vld [vmem:[%s184 + $0x1b0] sm:$0xff]
        %v264 = vld [vmem:[%s184 + $0x1b8] sm:$0xff]
        %v265 = vld [vmem:[%s184 + $0x1c0] sm:$0xff]
        %v266 = vld [vmem:[%s184 + $0x1c8] sm:$0xff]
        %v267 = vld [vmem:[%s184 + $0x1d0] sm:$0xff]
        %v268 = vld [vmem:[%s184 + $0x1d8] sm:$0xff]
        %v269 = vld [vmem:[%s184 + $0x1e0] sm:$0xff]
        %v270 = vld [vmem:[%s184 + $0x1e8] sm:$0xff]
        %v271 = vld [vmem:[%s184 + $0x1f0] sm:$0xff]
        %v272 = vld [vmem:[%s184 + $0x1f8] sm:$0xff]
        %v273 = vadd.f32 %v209, %v225
        %v274 = vadd.f32 %v273, %v241
        %v275 = vadd.f32 %v274, %v257
        %v276 = vrot.slane %v275, 4
        %v277 = vadd.f32 %v275, %v276
        %v278 = vrot.slane %v277, 2
        %v279 = vadd.f32 %v277, %v278
        %v280 = vrot.slane %v279, 1
        %v281 = vadd.f32 %v279, %v280
        %v282 = vadd.f32 %v210, %v226
        %v283 = vadd.f32 %v282, %v242
        %v284 = vadd.f32 %v283, %v258
        %v285 = vrot.slane %v284, 4
        %v286 = vadd.f32 %v284, %v285
        %v287 = vrot.slane %v286, 2
        %v288 = vadd.f32 %v286, %v287
        %v289 = vrot.slane %v288, 1
        %v290 = vadd.f32 %v288, %v289
        %v291 = vadd.f32 %v211, %v227
        %v292 = vadd.f32 %v291, %v243
        %v293 = vadd.f32 %v292, %v259
        %v294 = vrot.slane %v293, 4
        %v295 = vadd.f32 %v293, %v294
        %v296 = vrot.slane %v295, 2
        %v297 = vadd.f32 %v295, %v296
        %v298 = vrot.slane %v297, 1
        %v299 = vadd.f32 %v297, %v298
        %v300 = vadd.f32 %v212, %v228
        %v301 = vadd.f32 %v300, %v244
        %v302 = vadd.f32 %v301, %v260
        %v303 = vrot.slane %v302, 4
        %v304 = vadd.f32 %v302, %v303
        %v305 = vrot.slane %v304, 2
        %v306 = vadd.f32 %v304, %v305
        %v307 = vrot.slane %v306, 1
        %v308 = vadd.f32 %v306, %v307
        %v309 = vadd.f32 %v213, %v229
        %v310 = vadd.f32 %v309, %v245
        %v311 = vadd.f32 %v310, %v261
        %v312 = vrot.slane %v311, 4
        %v313 = vadd.f32 %v311, %v312
        %v314 = vrot.slane %v313, 2
        %v315 = vadd.f32 %v313, %v314
        %v316 = vrot.slane %v315, 1
        %v317 = vadd.f32 %v315, %v316
        %v318 = vadd.f32 %v214, %v230
        %v319 = vadd.f32 %v318, %v246
        %v320 = vadd.f32 %v319, %v262
        %v321 = vrot.slane %v320, 4
        %v322 = vadd.f32 %v320, %v321
        %v323 = vrot.slane %v322, 2
        %v324 = vadd.f32 %v322, %v323
        %v325 = vrot.slane %v324, 1
        %v326 = vadd.f32 %v324, %v325
        %v327 = vadd.f32 %v215, %v231
        %v328 = vadd.f32 %v327, %v247
        %v329 = vadd.f32 %v328, %v263
        %v330 = vrot.slane %v329, 4
        %v331 = vadd.f32 %v329, %v330
        %v332 = vrot.slane %v331, 2
        %v333 = vadd.f32 %v331, %v332
        %v334 = vrot.slane %v333, 1
        %v335 = vadd.f32 %v333, %v334
        %v336 = vadd.f32 %v216, %v232
        %v337 = vadd.f32 %v336, %v248
        %v338 = vadd.f32 %v337, %v264
        %v339 = vrot.slane %v338, 4
        %v340 = vadd.f32 %v338, %v339
        %v341 = vrot.slane %v340, 2
        %v342 = vadd.f32 %v340, %v341
        %v343 = vrot.slane %v342, 1
        %v344 = vadd.f32 %v342, %v343
        %v345 = vadd.f32 %v217, %v233
        %v346 = vadd.f32 %v345, %v249
        %v347 = vadd.f32 %v346, %v265
        %v348 = vrot.slane %v347, 4
        %v349 = vadd.f32 %v347, %v348
        %v350 = vrot.slane %v349, 2
        %v351 = vadd.f32 %v349, %v350
        %v352 = vrot.slane %v351, 1
        %v353 = vadd.f32 %v351, %v352
        %v354 = vadd.f32 %v218, %v234
        %v355 = vadd.f32 %v354, %v250
        %v356 = vadd.f32 %v355, %v266
        %v357 = vrot.slane %v356, 4
        %v358 = vadd.f32 %v356, %v357
        %v359 = vrot.slane %v358, 2
        %v360 = vadd.f32 %v358, %v359
        %v361 = vrot.slane %v360, 1
        %v362 = vadd.f32 %v360, %v361
        %v363 = vadd.f32 %v219, %v235
        %v364 = vadd.f32 %v363, %v251
        %v365 = vadd.f32 %v364, %v267
        %v366 = vrot.slane %v365, 4
        %v367 = vadd.f32 %v365, %v366
        %v368 = vrot.slane %v367, 2
        %v369 = vadd.f32 %v367, %v368
        %v370 = vrot.slane %v369, 1
        %v371 = vadd.f32 %v369, %v370
        %v372 = vadd.f32 %v220, %v236
        %v373 = vadd.f32 %v372, %v252
        %v374 = vadd.f32 %v373, %v268
        %v375 = vrot.slane %v374, 4
        %v376 = vadd.f32 %v374, %v375
        %v377 = vrot.slane %v376, 2
        %v378 = vadd.f32 %v376, %v377
        %v379 = vrot.slane %v378, 1
        %v380 = vadd.f32 %v378, %v379
        %v381 = vadd.f32 %v221, %v237
        %v382 = vadd.f32 %v381, %v253
        %v383 = vadd.f32 %v382, %v269
        %v384 = vrot.slane %v383, 4
        %v385 = vadd.f32 %v383, %v384
        %v386 = vrot.slane %v385, 2
        %v387 = vadd.f32 %v385, %v386
        %v388 = vrot.slane %v387, 1
        %v389 = vadd.f32 %v387, %v388
        %v390 = vadd.f32 %v222, %v238
        %v391 = vadd.f32 %v390, %v254
        %v392 = vadd.f32 %v391, %v270
        %v393 = vrot.slane %v392, 4
        %v394 = vadd.f32 %v392, %v393
        %v395 = vrot.slane %v394, 2
        %v396 = vadd.f32 %v394, %v395
        %v397 = vrot.slane %v396, 1
        %v398 = vadd.f32 %v396, %v397
        %v399 = vadd.f32 %v223, %v239
        %v400 = vadd.f32 %v399, %v255
        %v401 = vadd.f32 %v400, %v271
        %v402 = vrot.slane %v401, 4
        %v403 = vadd.f32 %v401, %v402
        %v404 = vrot.slane %v403, 2
        %v405 = vadd.f32 %v403, %v404
        %v406 = vrot.slane %v405, 1
        %v407 = vadd.f32 %v405, %v406
        %v408 = vadd.f32 %v224, %v240
        %v409 = vadd.f32 %v408, %v256
        %v410 = vadd.f32 %v409, %v272
        %v411 = vrot.slane %v410, 4
        %v412 = vadd.f32 %v410, %v411
        %v413 = vrot.slane %v412, 2
        %v414 = vadd.f32 %v412, %v413
        %v415 = vrot.slane %v414, 1
        %v416 = vadd.f32 %v414, %v415
        %v417 = vrcp.pop 32.0
        %v418 = vmul.f32 %v281, %v417
        %v419 = vmul.f32 %v290, %v417
        %v420 = vmul.f32 %v299, %v417
        %v421 = vmul.f32 %v308, %v417
        %v422 = vmul.f32 %v317, %v417
        %v423 = vmul.f32 %v326, %v417
        %v424 = vmul.f32 %v335, %v417
        %v425 = vmul.f32 %v344, %v417
        %v426 = vmul.f32 %v353, %v417
        %v427 = vmul.f32 %v362, %v417
        %v428 = vmul.f32 %v371, %v417
        %v429 = vmul.f32 %v380, %v417
        %v430 = vmul.f32 %v389, %v417
        %v431 = vmul.f32 %v398, %v417
        %v432 = vmul.f32 %v407, %v417
        %v433 = vmul.f32 %v416, %v417
        %v434 = vsub.f32 %v209, %v418
        %v435 = vsub.f32 %v210, %v419
        %v436 = vsub.f32 %v211, %v420
        %v437 = vsub.f32 %v212, %v421
        %v438 = vsub.f32 %v213, %v422
        %v439 = vsub.f32 %v214, %v423
        %v440 = vsub.f32 %v215, %v424
        %v441 = vsub.f32 %v216, %v425
        %v442 = vsub.f32 %v217, %v426
        %v443 = vsub.f32 %v218, %v427
        %v444 = vsub.f32 %v219, %v428
        %v445 = vsub.f32 %v220, %v429
        %v446 = vsub.f32 %v221, %v430
        %v447 = vsub.f32 %v222, %v431
        %v448 = vsub.f32 %v223, %v432
        %v449 = vsub.f32 %v224, %v433
        %v450 = vsub.f32 %v225, %v418
        %v451 = vsub.f32 %v226, %v419
        %v452 = vsub.f32 %v227, %v420
        %v453 = vsub.f32 %v228, %v421
        %v454 = vsub.f32 %v229, %v422
        %v455 = vsub.f32 %v230, %v423
        %v456 = vsub.f32 %v231, %v424
        %v457 = vsub.f32 %v232, %v425
        %v458 = vsub.f32 %v233, %v426
        %v459 = vsub.f32 %v234, %v427
        %v460 = vsub.f32 %v235, %v428
        %v461 = vsub.f32 %v236, %v429
        %v462 = vsub.f32 %v237, %v430
        %v463 = vsub.f32 %v238, %v431
        %v464 = vsub.f32 %v239, %v432
        %v465 = vsub.f32 %v240, %v433
        %v466 = vsub.f32 %v241, %v418
        %v467 = vsub.f32 %v242, %v419
        %v468 = vsub.f32 %v243, %v420
        %v469 = vsub.f32 %v244, %v421
        %v470 = vsub.f32 %v245, %v422
        %v471 = vsub.f32 %v246, %v423
        %v472 = vsub.f32 %v247, %v424
        %v473 = vsub.f32 %v248, %v425
        %v474 = vsub.f32 %v249, %v426
        %v475 = vsub.f32 %v250, %v427
        %v476 = vsub.f32 %v251, %v428
        %v477 = vsub.f32 %v252, %v429
        %v478 = vsub.f32 %v253, %v430
        %v479 = vsub.f32 %v254, %v431
        %v480 = vsub.f32 %v255, %v432
        %v481 = vsub.f32 %v256, %v433
        %v482 = vsub.f32 %v257, %v418
        %v483 = vsub.f32 %v258, %v419
        %v484 = vsub.f32 %v259, %v420
        %v485 = vsub.f32 %v260, %v421
        %v486 = vsub.f32 %v261, %v422
        %v487 = vsub.f32 %v262, %v423
        %v488 = vsub.f32 %v263, %v424
        %v489 = vsub.f32 %v264, %v425
        %v490 = vsub.f32 %v265, %v426
        %v491 = vsub.f32 %v266, %v427
        %v492 = vsub.f32 %v267, %v428
        %v493 = vsub.f32 %v268, %v429
        %v494 = vsub.f32 %v269, %v430
        %v495 = vsub.f32 %v270, %v431
        %v496 = vsub.f32 %v271, %v432
        %v497 = vsub.f32 %v272, %v433
        %v498 = vmul.f32 %v434, %v434
        %v499 = vmul.f32 %v435, %v435
        %v500 = vmul.f32 %v436, %v436
        %v501 = vmul.f32 %v437, %v437
        %v502 = vmul.f32 %v438, %v438
        %v503 = vmul.f32 %v439, %v439
        %v504 = vmul.f32 %v440, %v440
        %v505 = vmul.f32 %v441, %v441
        %v506 = vmul.f32 %v442, %v442
        %v507 = vmul.f32 %v443, %v443
        %v508 = vmul.f32 %v444, %v444
        %v509 = vmul.f32 %v445, %v445
        %v510 = vmul.f32 %v446, %v446
        %v511 = vmul.f32 %v447, %v447
        %v512 = vmul.f32 %v448, %v448
        %v513 = vmul.f32 %v449, %v449
        %v514 = vmul.f32 %v450, %v450
        %v515 = vmul.f32 %v451, %v451
        %v516 = vmul.f32 %v452, %v452
        %v517 = vmul.f32 %v453, %v453
        %v518 = vmul.f32 %v454, %v454
        %v519 = vmul.f32 %v455, %v455
        %v520 = vmul.f32 %v456, %v456
        %v521 = vmul.f32 %v457, %v457
        %v522 = vmul.f32 %v458, %v458
        %v523 = vmul.f32 %v459, %v459
        %v524 = vmul.f32 %v460, %v460
        %v525 = vmul.f32 %v461, %v461
        %v526 = vmul.f32 %v462, %v462
        %v527 = vmul.f32 %v463, %v463
        %v528 = vmul.f32 %v464, %v464
        %v529 = vmul.f32 %v465, %v465
        %v530 = vmul.f32 %v466, %v466
        %v531 = vmul.f32 %v467, %v467
        %v532 = vmul.f32 %v468, %v468
        %v533 = vmul.f32 %v469, %v469
        %v534 = vmul.f32 %v470, %v470
        %v535 = vmul.f32 %v471, %v471
        %v536 = vmul.f32 %v472, %v472
        %v537 = vmul.f32 %v473, %v473
        %v538 = vmul.f32 %v474, %v474
        %v539 = vmul.f32 %v475, %v475
        %v540 = vmul.f32 %v476, %v476
        %v541 = vmul.f32 %v477, %v477
        %v542 = vmul.f32 %v478, %v478
        %v543 = vmul.f32 %v479, %v479
        %v544 = vmul.f32 %v480, %v480
        %v545 = vmul.f32 %v481, %v481
        %v546 = vmul.f32 %v482, %v482
        %v547 = vmul.f32 %v483, %v483
        %v548 = vmul.f32 %v484, %v484
        %v549 = vmul.f32 %v485, %v485
        %v550 = vmul.f32 %v486, %v486
        %v551 = vmul.f32 %v487, %v487
        %v552 = vmul.f32 %v488, %v488
        %v553 = vmul.f32 %v489, %v489
        %v554 = vmul.f32 %v490, %v490
        %v555 = vmul.f32 %v491, %v491
        %v556 = vmul.f32 %v492, %v492
        %v557 = vmul.f32 %v493, %v493
        %v558 = vmul.f32 %v494, %v494
        %v559 = vmul.f32 %v495, %v495
        %v560 = vmul.f32 %v496, %v496
        %v561 = vmul.f32 %v497, %v497
        %v562 = vadd.f32 %v498, %v514
        %v563 = vadd.f32 %v562, %v530
        %v564 = vadd.f32 %v563, %v546
        %v565 = vrot.slane %v564, 4
        %v566 = vadd.f32 %v564, %v565
        %v567 = vrot.slane %v566, 2
        %v568 = vadd.f32 %v566, %v567
        %v569 = vrot.slane %v568, 1
        %v570 = vadd.f32 %v568, %v569
        %v571 = vadd.f32 %v499, %v515
        %v572 = vadd.f32 %v571, %v531
        %v573 = vadd.f32 %v572, %v547
        %v574 = vrot.slane %v573, 4
        %v575 = vadd.f32 %v573, %v574
        %v576 = vrot.slane %v575, 2
        %v577 = vadd.f32 %v575, %v576
        %v578 = vrot.slane %v577, 1
        %v579 = vadd.f32 %v577, %v578
        %v580 = vadd.f32 %v500, %v516
        %v581 = vadd.f32 %v580, %v532
        %v582 = vadd.f32 %v581, %v548
        %v583 = vrot.slane %v582, 4
        %v584 = vadd.f32 %v582, %v583
        %v585 = vrot.slane %v584, 2
        %v586 = vadd.f32 %v584, %v585
        %v587 = vrot.slane %v586, 1
        %v588 = vadd.f32 %v586, %v587
        %v589 = vadd.f32 %v501, %v517
        %v590 = vadd.f32 %v589, %v533
        %v591 = vadd.f32 %v590, %v549
        %v592 = vrot.slane %v591, 4
        %v593 = vadd.f32 %v591, %v592
        %v594 = vrot.slane %v593, 2
        %v595 = vadd.f32 %v593, %v594
        %v596 = vrot.slane %v595, 1
        %v597 = vadd.f32 %v595, %v596
        %v598 = vadd.f32 %v502, %v518
        %v599 = vadd.f32 %v598, %v534
        %v600 = vadd.f32 %v599, %v550
        %v601 = vrot.slane %v600, 4
        %v602 = vadd.f32 %v600, %v601
        %v603 = vrot.slane %v602, 2
        %v604 = vadd.f32 %v602, %v603
        %v605 = vrot.slane %v604, 1
        %v606 = vadd.f32 %v604, %v605
        %v607 = vadd.f32 %v503, %v519
        %v608 = vadd.f32 %v607, %v535
        %v609 = vadd.f32 %v608, %v551
        %v610 = vrot.slane %v609, 4
        %v611 = vadd.f32 %v609, %v610
        %v612 = vrot.slane %v611, 2
        %v613 = vadd.f32 %v611, %v612
        %v614 = vrot.slane %v613, 1
        %v615 = vadd.f32 %v613, %v614
        %v616 = vadd.f32 %v504, %v520
        %v617 = vadd.f32 %v616, %v536
        %v618 = vadd.f32 %v617, %v552
        %v619 = vrot.slane %v618, 4
        %v620 = vadd.f32 %v618, %v619
        %v621 = vrot.slane %v620, 2
        %v622 = vadd.f32 %v620, %v621
        %v623 = vrot.slane %v622, 1
        %v624 = vadd.f32 %v622, %v623
        %v625 = vadd.f32 %v505, %v521
        %v626 = vadd.f32 %v625, %v537
        %v627 = vadd.f32 %v626, %v553
        %v628 = vrot.slane %v627, 4
        %v629 = vadd.f32 %v627, %v628
        %v630 = vrot.slane %v629, 2
        %v631 = vadd.f32 %v629, %v630
        %v632 = vrot.slane %v631, 1
        %v633 = vadd.f32 %v631, %v632
        %v634 = vadd.f32 %v506, %v522
        %v635 = vadd.f32 %v634, %v538
        %v636 = vadd.f32 %v635, %v554
        %v637 = vrot.slane %v636, 4
        %v638 = vadd.f32 %v636, %v637
        %v639 = vrot.slane %v638, 2
        %v640 = vadd.f32 %v638, %v639
        %v641 = vrot.slane %v640, 1
        %v642 = vadd.f32 %v640, %v641
        %v643 = vadd.f32 %v507, %v523
        %v644 = vadd.f32 %v643, %v539
        %v645 = vadd.f32 %v644, %v555
        %v646 = vrot.slane %v645, 4
        %v647 = vadd.f32 %v645, %v646
        %v648 = vrot.slane %v647, 2
        %v649 = vadd.f32 %v647, %v648
        %v650 = vrot.slane %v649, 1
        %v651 = vadd.f32 %v649, %v650
        %v652 = vadd.f32 %v508, %v524
        %v653 = vadd.f32 %v652, %v540
        %v654 = vadd.f32 %v653, %v556
        %v655 = vrot.slane %v654, 4
        %v656 = vadd.f32 %v654, %v655
        %v657 = vrot.slane %v656, 2
        %v658 = vadd.f32 %v656, %v657
        %v659 = vrot.slane %v658, 1
        %v660 = vadd.f32 %v658, %v659
        %v661 = vadd.f32 %v509, %v525
        %v662 = vadd.f32 %v661, %v541
        %v663 = vadd.f32 %v662, %v557
        %v664 = vrot.slane %v663, 4
        %v665 = vadd.f32 %v663, %v664
        %v666 = vrot.slane %v665, 2
        %v667 = vadd.f32 %v665, %v666
        %v668 = vrot.slane %v667, 1
        %v669 = vadd.f32 %v667, %v668
        %v670 = vadd.f32 %v510, %v526
        %v671 = vadd.f32 %v670, %v542
        %v672 = vadd.f32 %v671, %v558
        %v673 = vrot.slane %v672, 4
        %v674 = vadd.f32 %v672, %v673
        %v675 = vrot.slane %v674, 2
        %v676 = vadd.f32 %v674, %v675
        %v677 = vrot.slane %v676, 1
        %v678 = vadd.f32 %v676, %v677
        %v679 = vadd.f32 %v511, %v527
        %v680 = vadd.f32 %v679, %v543
        %v681 = vadd.f32 %v680, %v559
        %v682 = vrot.slane %v681, 4
        %v683 = vadd.f32 %v681, %v682
        %v684 = vrot.slane %v683, 2
        %v685 = vadd.f32 %v683, %v684
        %v686 = vrot.slane %v685, 1
        %v687 = vadd.f32 %v685, %v686
        %v688 = vadd.f32 %v512, %v528
        %v689 = vadd.f32 %v688, %v544
        %v690 = vadd.f32 %v689, %v560
        %v691 = vrot.slane %v690, 4
        %v692 = vadd.f32 %v690, %v691
        %v693 = vrot.slane %v692, 2
        %v694 = vadd.f32 %v692, %v693
        %v695 = vrot.slane %v694, 1
        %v696 = vadd.f32 %v694, %v695
        %v697 = vadd.f32 %v513, %v529
        %v698 = vadd.f32 %v697, %v545
        %v699 = vadd.f32 %v698, %v561
        %v700 = vrot.slane %v699, 4
        %v701 = vadd.f32 %v699, %v700
        %v702 = vrot.slane %v701, 2
        %v703 = vadd.f32 %v701, %v702
        %v704 = vrot.slane %v703, 1
        %v705 = vadd.f32 %v703, %v704
        %v706 = vmul.f32 %v570, %v417
        %v707 = vmul.f32 %v579, %v417
        %v708 = vmul.f32 %v588, %v417
        %v709 = vmul.f32 %v597, %v417
        %v710 = vmul.f32 %v606, %v417
        %v711 = vmul.f32 %v615, %v417
        %v712 = vmul.f32 %v624, %v417
        %v713 = vmul.f32 %v633, %v417
        %v714 = vmul.f32 %v642, %v417
        %v715 = vmul.f32 %v651, %v417
        %v716 = vmul.f32 %v660, %v417
        %v717 = vmul.f32 %v669, %v417
        %v718 = vmul.f32 %v678, %v417
        %v719 = vmul.f32 %v687, %v417
        %v720 = vmul.f32 %v696, %v417
        %v721 = vmul.f32 %v705, %v417
        %v722 = vadd.f32 %v706, 1e-05
        %v723 = vadd.f32 %v707, 1e-05
        %v724 = vadd.f32 %v708, 1e-05
        %v725 = vadd.f32 %v709, 1e-05
        %v726 = vadd.f32 %v710, 1e-05
        %v727 = vadd.f32 %v711, 1e-05
        %v728 = vadd.f32 %v712, 1e-05
        %v729 = vadd.f32 %v713, 1e-05
        %v730 = vadd.f32 %v714, 1e-05
        %v731 = vadd.f32 %v715, 1e-05
        %v732 = vadd.f32 %v716, 1e-05
        %v733 = vadd.f32 %v717, 1e-05
        %v734 = vadd.f32 %v718, 1e-05
        %v735 = vadd.f32 %v719, 1e-05
        %v736 = vadd.f32 %v720, 1e-05
        %v737 = vadd.f32 %v721, 1e-05
        %v738 = vrsqrt.pop %v722
        %v739 = vrsqrt.pop %v723
        %v740 = vrsqrt.pop %v724
        %v741 = vrsqrt.pop %v725
        %v742 = vrsqrt.pop %v726
        %v743 = vrsqrt.pop %v727
        %v744 = vrsqrt.pop %v728
        %v745 = vrsqrt.pop %v729
        %v746 = vrsqrt.pop %v730
        %v747 = vrsqrt.pop %v731
        %v748 = vrsqrt.pop %v732
        %v749 = vrsqrt.pop %v733
        %v750 = vrsqrt.pop %v734
        %v751 = vrsqrt.pop %v735
        %v752 = vrsqrt.pop %v736
        %v753 = vrsqrt.pop %v737
        %v754 = vmul.f32 %v434, %v738
        %v755 = vmul.f32 %v435, %v739
        %v756 = vmul.f32 %v436, %v740
        %v757 = vmul.f32 %v437, %v741
        %v758 = vmul.f32 %v438, %v742
        %v759 = vmul.f32 %v439, %v743
        %v760 = vmul.f32 %v440, %v744
        %v761 = vmul.f32 %v441, %v745
        %v762 = vmul.f32 %v442, %v746
        %v763 = vmul.f32 %v443, %v747
        %v764 = vmul.f32 %v444, %v748
        %v765 = vmul.f32 %v445, %v749
        %v766 = vmul.f32 %v446, %v750
        %v767 = vmul.f32 %v447, %v751
        %v768 = vmul.f32 %v448, %v752
        %v769 = vmul.f32 %v449, %v753
        %v770 = vmul.f32 %v450, %v738
        %v771 = vmul.f32 %v451, %v739
        %v772 = vmul.f32 %v452, %v740
        %v773 = vmul.f32 %v453, %v741
        %v774 = vmul.f32 %v454, %v742
        %v775 = vmul.f32 %v455, %v743
        %v776 = vmul.f32 %v456, %v744
        %v777 = vmul.f32 %v457, %v745
        %v778 = vmul.f32 %v458, %v746
        %v779 = vmul.f32 %v459, %v747
        %v780 = vmul.f32 %v460, %v748
        %v781 = vmul.f32 %v461, %v749
        %v782 = vmul.f32 %v462, %v750
        %v783 = vmul.f32 %v463, %v751
        %v784 = vmul.f32 %v464, %v752
        %v785 = vmul.f32 %v465, %v753
        %v786 = vmul.f32 %v466, %v738
        %v787 = vmul.f32 %v467, %v739
        %v788 = vmul.f32 %v468, %v740
        %v789 = vmul.f32 %v469, %v741
        %v790 = vmul.f32 %v470, %v742
        %v791 = vmul.f32 %v471, %v743
        %v792 = vmul.f32 %v472, %v744
        %v793 = vmul.f32 %v473, %v745
        %v794 = vmul.f32 %v474, %v746
        %v795 = vmul.f32 %v475, %v747
        %v796 = vmul.f32 %v476, %v748
        %v797 = vmul.f32 %v477, %v749
        %v798 = vmul.f32 %v478, %v750
        %v799 = vmul.f32 %v479, %v751
        %v800 = vmul.f32 %v480, %v752
        %v801 = vmul.f32 %v481, %v753
        %v802 = vmul.f32 %v482, %v738
        %v803 = vmul.f32 %v483, %v739
        %v804 = vmul.f32 %v484, %v740
        %v805 = vmul.f32 %v485, %v741
        %v806 = vmul.f32 %v486, %v742
        %v807 = vmul.f32 %v487, %v743
        %v808 = vmul.f32 %v488, %v744
        %v809 = vmul.f32 %v489, %v745
        %v810 = vmul.f32 %v490, %v746
        %v811 = vmul.f32 %v491, %v747
        %v812 = vmul.f32 %v492, %v748
        %v813 = vmul.f32 %v493, %v749
        %v814 = vmul.f32 %v494, %v750
        %v815 = vmul.f32 %v495, %v751
        %v816 = vmul.f32 %v496, %v752
        %v817 = vmul.f32 %v497, %v753
        %v818 = vld [vmem:[%s1] sm:$0xff]
        %v819 = vld [vmem:[%s1 + $0x8] sm:$0xff]
        %v820 = vld [vmem:[%s1 + $0x10] sm:$0xff]
        %v821 = vld [vmem:[%s1 + $0x18] sm:$0xff]
        %v822 = vld [vmem:[%s2] sm:$0xff]
        %v823 = vld [vmem:[%s2 + $0x8] sm:$0xff]
        %v824 = vld [vmem:[%s2 + $0x10] sm:$0xff]
        %v825 = vld [vmem:[%s2 + $0x18] sm:$0xff]
        %827 = vset.pattern.permute.xlu0 0
        %828 = vperm.xlu0 %827, %v822
        %v829 = vpop.permute.xlu0 %828
        %832 = vset.pattern.permute.xlu0 0
        %833 = vperm.xlu0 %832, %v823
        %v834 = vpop.permute.xlu0 %833
        %837 = vset.pattern.permute.xlu0 0
        %838 = vperm.xlu0 %837, %v824
        %v839 = vpop.permute.xlu0 %838
        %842 = vset.pattern.permute.xlu0 0
        %843 = vperm.xlu0 %842, %v825
        %v844 = vpop.permute.xlu0 %843
        %vm846 = vcmask 261120
        %v848 = vsel %vm846, %v818, 0
        %v851 = vsel %vm846, %v819, 0
        %v854 = vsel %vm846, %v820, 0
        %v857 = vsel %vm846, %v821, 0
        %859 = vmatprep.subr.mxu0 %v755
        %860 = vmatpush1.msra.mxu0 %v754
        %861 = vmatprep.subr.mxu0 %v771
        %862 = vmatpush1.msra.mxu0 %v770
        %863 = vmatprep.subr.mxu0 %v787
        %864 = vmatpush1.msra.mxu0 %v786
        %865 = vmatprep.subr.mxu0 %v803
        %866 = vmatpush1.msra.mxu0 %v802
        %867 = vmatprep.subr.mxu0 0.0
        %868 = vmatpush1.msra.mxu0 0.0
        %869 = vmatprep.subr.mxu0 0.0
        %870 = vmatpush1.msra.mxu0 0.0
        %871 = vmatprep.subr.mxu0 0.0
        %872 = vmatpush1.msra.mxu0 0.0
        %873 = vmatprep.subr.mxu0 0.0
        %874 = vmatpush1.msra.mxu0 0.0
        %875 = vmatprep.subr.mxu0 0.0
        %876 = vmatpush1.msra.mxu0 0.0
        %877 = vmatprep.subr.mxu0 0.0
        %878 = vmatpush1.msra.mxu0 0.0
        %879 = vmatprep.subr.mxu0 0.0
        %880 = vmatpush1.msra.mxu0 0.0
        %881 = vmatprep.subr.mxu0 0.0
        %882 = vmatpush1.msra.mxu0 0.0
        %883 = vmatprep.subr.mxu0 0.0
        %884 = vmatpush1.msra.mxu0 0.0
        %885 = vmatprep.subr.mxu0 0.0
        %886 = vmatpush1.msra.mxu0 0.0
        %887 = vmatprep.subr.mxu0 0.0
        %888 = vmatpush1.msra.mxu0 0.0
        %889 = vmatprep.subr.mxu0 0.0
        %890 = vmatpush1.msra.mxu0 0.0
        %891 = vmatprep.subr.mxu0 0.0
        %892 = vmatpush1.msra.mxu0 0.0
        %893 = vmatprep.subr.mxu0 0.0
        %894 = vmatpush1.msra.mxu0 0.0
        %895 = vmatprep.subr.mxu0 0.0
        %896 = vmatpush1.msra.mxu0 0.0
        %897 = vmatprep.subr.mxu0 0.0
        %898 = vmatpush1.msra.mxu0 0.0
        %899 = vmatprep.subr.mxu0 0.0
        %900 = vmatpush1.msra.mxu0 0.0
        %901 = vmatprep.subr.mxu0 0.0
        %902 = vmatpush1.msra.mxu0 0.0
        %903 = vmatprep.subr.mxu0 0.0
        %904 = vmatpush1.msra.mxu0 0.0
        %905 = vmatprep.subr.mxu0 0.0
        %906 = vmatpush1.msra.mxu0 0.0
        %907 = vmatprep.subr.mxu0 0.0
        %908 = vmatpush1.msra.mxu0 0.0
        %909 = vmatprep.subr.mxu0 0.0
        %910 = vmatpush1.msra.mxu0 0.0
        %911 = vmatprep.subr.mxu0 0.0
        %912 = vmatpush1.msra.mxu0 0.0
        %913 = vmatprep.subr.mxu0 0.0
        %914 = vmatpush1.msra.mxu0 0.0
        %915 = vmatprep.subr.mxu0 0.0
        %916 = vmatpush1.msra.mxu0 0.0
        %917 = vmatprep.subr.mxu0 0.0
        %918 = vmatpush1.msra.mxu0 0.0
        %919 = vmatprep.subr.mxu0 0.0
        %920 = vmatpush1.msra.mxu0 0.0
        %921 = vmatprep.subr.mxu0 0.0
        %922 = vmatpush1.msra.mxu0 0.0
        %923 = vmatprep.mubr.f32.mxu0 0.0
        %924 = vmatmul.mubr.f32.gmra.mrb[0].mxu0 %v848
        %v925 = vpop.f32.mrb[0].mxu0
        %v926 = vadd.f32 %v829, %v925
        %v927 = vpop.f32.mrb[0].mxu0
        %v928 = vadd.f32 %v829, %v927
        %929 = vmatprep.mubr.f32.mxu0 0.0
        %930 = vmatmul.mubr.f32.gmra.mrb[0].mxu0 %v851
        %v931 = vpop.f32.mrb[0].mxu0
        %v932 = vadd.f32 %v834, %v931
        %v933 = vpop.f32.mrb[0].mxu0
        %v934 = vadd.f32 %v834, %v933
        %935 = vmatprep.mubr.f32.mxu0 0.0
        %936 = vmatmul.mubr.f32.gmra.mrb[0].mxu0 %v854
        %v937 = vpop.f32.mrb[0].mxu0
        %v938 = vadd.f32 %v839, %v937
        %v939 = vpop.f32.mrb[0].mxu0
        %v940 = vadd.f32 %v839, %v939
        %941 = vmatprep.mubr.f32.mxu0 0.0
        %942 = vmatmul.mubr.f32.gmra.mrb[0].mxu0 %v857
        %v943 = vpop.f32.mrb[0].mxu0
        %v944 = vadd.f32 %v844, %v943
        %v945 = vpop.f32.mrb[0].mxu0
        %v946 = vadd.f32 %v844, %v945
        %947 = vdwg.mxu0
        %948 = vmatprep.subr.mxu0 %v757
        %949 = vmatpush1.msra.mxu0 %v756
        %950 = vmatprep.subr.mxu0 %v773
        %951 = vmatpush1.msra.mxu0 %v772
        %952 = vmatprep.subr.mxu0 %v789
        %953 = vmatpush1.msra.mxu0 %v788
        %954 = vmatprep.subr.mxu0 %v805
        %955 = vmatpush1.msra.mxu0 %v804
        %956 = vmatprep.subr.mxu0 0.0
        %957 = vmatpush1.msra.mxu0 0.0
        %958 = vmatprep.subr.mxu0 0.0
        %959 = vmatpush1.msra.mxu0 0.0
        %960 = vmatprep.subr.mxu0 0.0
        %961 = vmatpush1.msra.mxu0 0.0
        %962 = vmatprep.subr.mxu0 0.0
        %963 = vmatpush1.msra.mxu0 0.0
        %964 = vmatprep.subr.mxu0 0.0
        %965 = vmatpush1.msra.mxu0 0.0
        %966 = vmatprep.subr.mxu0 0.0
        %967 = vmatpush1.msra.mxu0 0.0
        %968 = vmatprep.subr.mxu0 0.0
        %969 = vmatpush1.msra.mxu0 0.0
        %970 = vmatprep.subr.mxu0 0.0
        %971 = vmatpush1.msra.mxu0 0.0
        %972 = vmatprep.subr.mxu0 0.0
        %973 = vmatpush1.msra.mxu0 0.0
        %974 = vmatprep.subr.mxu0 0.0
        %975 = vmatpush1.msra.mxu0 0.0
        %976 = vmatprep.subr.mxu0 0.0
        %977 = vmatpush1.msra.mxu0 0.0
        %978 = vmatprep.subr.mxu0 0.0
        %979 = vmatpush1.msra.mxu0 0.0
        %980 = vmatprep.subr.mxu0 0.0
        %981 = vmatpush1.msra.mxu0 0.0
        %982 = vmatprep.subr.mxu0 0.0
        %983 = vmatpush1.msra.mxu0 0.0
        %984 = vmatprep.subr.mxu0 0.0
        %985 = vmatpush1.msra.mxu0 0.0
        %986 = vmatprep.subr.mxu0 0.0
        %987 = vmatpush1.msra.mxu0 0.0
        %988 = vmatprep.subr.mxu0 0.0
        %989 = vmatpush1.msra.mxu0 0.0
        %990 = vmatprep.subr.mxu0 0.0
        %991 = vmatpush1.msra.mxu0 0.0
        %992 = vmatprep.subr.mxu0 0.0
        %993 = vmatpush1.msra.mxu0 0.0
        %994 = vmatprep.subr.mxu0 0.0
        %995 = vmatpush1.msra.mxu0 0.0
        %996 = vmatprep.subr.mxu0 0.0
        %997 = vmatpush1.msra.mxu0 0.0
        %998 = vmatprep.subr.mxu0 0.0
        %999 = vmatpush1.msra.mxu0 0.0
        %1000 = vmatprep.subr.mxu0 0.0
        %1001 = vmatpush1.msra.mxu0 0.0
        %1002 = vmatprep.subr.mxu0 0.0
        %1003 = vmatpush1.msra.mxu0 0.0
        %1004 = vmatprep.subr.mxu0 0.0
        %1005 = vmatpush1.msra.mxu0 0.0
        %1006 = vmatprep.subr.mxu0 0.0
        %1007 = vmatpush1.msra.mxu0 0.0
        %1008 = vmatprep.subr.mxu0 0.0
        %1009 = vmatpush1.msra.mxu0 0.0
        %1010 = vmatprep.subr.mxu0 0.0
        %1011 = vmatpush1.msra.mxu0 0.0
        %1012 = vmatprep.mubr.f32.mxu0 0.0
        %1013 = vmatmul.mubr.f32.gmra.mrb[0].mxu0 %v848
        %v1014 = vpop.f32.mrb[0].mxu0
        %v1015 = vadd.f32 %v829, %v1014
        %v1016 = vpop.f32.mrb[0].mxu0
        %v1017 = vadd.f32 %v829, %v1016
        %1018 = vmatprep.mubr.f32.mxu0 0.0
        %1019 = vmatmul.mubr.f32.gmra.mrb[0].mxu0 %v851
        %v1020 = vpop.f32.mrb[0].mxu0
        %v1021 = vadd.f32 %v834, %v1020
        %v1022 = vpop.f32.mrb[0].mxu0
        %v1023 = vadd.f32 %v834, %v1022
        %1024 = vmatprep.mubr.f32.mxu0 0.0
        %1025 = vmatmul.mubr.f32.gmra.mrb[0].mxu0 %v854
        %v1026 = vpop.f32.mrb[0].mxu0
        %v1027 = vadd.f32 %v839, %v1026
        %v1028 = vpop.f32.mrb[0].mxu0
        %v1029 = vadd.f32 %v839, %v1028
        %1030 = vmatprep.mubr.f32.mxu0 0.0
        %1031 = vmatmul.mubr.f32.gmra.mrb[0].mxu0 %v857
        %v1032 = vpop.f32.mrb[0].mxu0
        %v1033 = vadd.f32 %v844, %v1032
        %v1034 = vpop.f32.mrb[0].mxu0
        %v1035 = vadd.f32 %v844, %v1034
        %1036 = vdwg.mxu0
        %1037 = vmatprep.subr.mxu0 %v759
        %1038 = vmatpush1.msra.mxu0 %v758
        %1039 = vmatprep.subr.mxu0 %v775
        %1040 = vmatpush1.msra.mxu0 %v774
        %1041 = vmatprep.subr.mxu0 %v791
        %1042 = vmatpush1.msra.mxu0 %v790
        %1043 = vmatprep.subr.mxu0 %v807
        %1044 = vmatpush1.msra.mxu0 %v806
        %1045 = vmatprep.subr.mxu0 0.0
        %1046 = vmatpush1.msra.mxu0 0.0
        %1047 = vmatprep.subr.mxu0 0.0
        %1048 = vmatpush1.msra.mxu0 0.0
        %1049 = vmatprep.subr.mxu0 0.0
        %1050 = vmatpush1.msra.mxu0 0.0
        %1051 = vmatprep.subr.mxu0 0.0
        %1052 = vmatpush1.msra.mxu0 0.0
        %1053 = vmatprep.subr.mxu0 0.0
        %1054 = vmatpush1.msra.mxu0 0.0
        %1055 = vmatprep.subr.mxu0 0.0
        %1056 = vmatpush1.msra.mxu0 0.0
        %1057 = vmatprep.subr.mxu0 0.0
        %1058 = vmatpush1.msra.mxu0 0.0
        %1059 = vmatprep.subr.mxu0 0.0
        %1060 = vmatpush1.msra.mxu0 0.0
        %1061 = vmatprep.subr.mxu0 0.0
        %1062 = vmatpush1.msra.mxu0 0.0
        %1063 = vmatprep.subr.mxu0 0.0
        %1064 = vmatpush1.msra.mxu0 0.0
        %1065 = vmatprep.subr.mxu0 0.0
        %1066 = vmatpush1.msra.mxu0 0.0
        %1067 = vmatprep.subr.mxu0 0.0
        %1068 = vmatpush1.msra.mxu0 0.0
        %1069 = vmatprep.subr.mxu0 0.0
        %1070 = vmatpush1.msra.mxu0 0.0
        %1071 = vmatprep.subr.mxu0 0.0
        %1072 = vmatpush1.msra.mxu0 0.0
        %1073 = vmatprep.subr.mxu0 0.0
        %1074 = vmatpush1.msra.mxu0 0.0
        %1075 = vmatprep.subr.mxu0 0.0
        %1076 = vmatpush1.msra.mxu0 0.0
        %1077 = vmatprep.subr.mxu0 0.0
        %1078 = vmatpush1.msra.mxu0 0.0
        %1079 = vmatprep.subr.mxu0 0.0
        %1080 = vmatpush1.msra.mxu0 0.0
        %1081 = vmatprep.subr.mxu0 0.0
        %1082 = vmatpush1.msra.mxu0 0.0
        %1083 = vmatprep.subr.mxu0 0.0
        %1084 = vmatpush1.msra.mxu0 0.0
        %1085 = vmatprep.subr.mxu0 0.0
        %1086 = vmatpush1.msra.mxu0 0.0
        %1087 = vmatprep.subr.mxu0 0.0
        %1088 = vmatpush1.msra.mxu0 0.0
        %1089 = vmatprep.subr.mxu0 0.0
        %1090 = vmatpush1.msra.mxu0 0.0
        %1091 = vmatprep.subr.mxu0 0.0
        %1092 = vmatpush1.msra.mxu0 0.0
        %1093 = vmatprep.subr.mxu0 0.0
        %1094 = vmatpush1.msra.mxu0 0.0
        %1095 = vmatprep.subr.mxu0 0.0
        %1096 = vmatpush1.msra.mxu0 0.0
        %1097 = vmatprep.subr.mxu0 0.0
        %1098 = vmatpush1.msra.mxu0 0.0
        %1099 = vmatprep.subr.mxu0 0.0
        %1100 = vmatpush1.msra.mxu0 0.0
        %1101 = vmatprep.mubr.f32.mxu0 0.0
        %1102 = vmatmul.mubr.f32.gmra.mrb[0].mxu0 %v848
        %v1103 = vpop.f32.mrb[0].mxu0
        %v1104 = vadd.f32 %v829, %v1103
        %v1105 = vpop.f32.mrb[0].mxu0
        %v1106 = vadd.f32 %v829, %v1105
        %1107 = vmatprep.mubr.f32.mxu0 0.0
        %1108 = vmatmul.mubr.f32.gmra.mrb[0].mxu0 %v851
        %v1109 = vpop.f32.mrb[0].mxu0
        %v1110 = vadd.f32 %v834, %v1109
        %v1111 = vpop.f32.mrb[0].mxu0
        %v1112 = vadd.f32 %v834, %v1111
        %1113 = vmatprep.mubr.f32.mxu0 0.0
        %1114 = vmatmul.mubr.f32.gmra.mrb[0].mxu0 %v854
        %v1115 = vpop.f32.mrb[0].mxu0
        %v1116 = vadd.f32 %v839, %v1115
        %v1117 = vpop.f32.mrb[0].mxu0
        %v1118 = vadd.f32 %v839, %v1117
        %1119 = vmatprep.mubr.f32.mxu0 0.0
        %1120 = vmatmul.mubr.f32.gmra.mrb[0].mxu0 %v857
        %v1121 = vpop.f32.mrb[0].mxu0
        %v1122 = vadd.f32 %v844, %v1121
        %v1123 = vpop.f32.mrb[0].mxu0
        %v1124 = vadd.f32 %v844, %v1123
        %1125 = vdwg.mxu0
        %1126 = vmatprep.subr.mxu0 %v761
        %1127 = vmatpush1.msra.mxu0 %v760
        %1128 = vmatprep.subr.mxu0 %v777
        %1129 = vmatpush1.msra.mxu0 %v776
        %1130 = vmatprep.subr.mxu0 %v793
        %1131 = vmatpush1.msra.mxu0 %v792
        %1132 = vmatprep.subr.mxu0 %v809
        %1133 = vmatpush1.msra.mxu0 %v808
        %1134 = vmatprep.subr.mxu0 0.0
        %1135 = vmatpush1.msra.mxu0 0.0
        %1136 = vmatprep.subr.mxu0 0.0
        %1137 = vmatpush1.msra.mxu0 0.0
        %1138 = vmatprep.subr.mxu0 0.0
        %1139 = vmatpush1.msra.mxu0 0.0
        %1140 = vmatprep.subr.mxu0 0.0
        %1141 = vmatpush1.msra.mxu0 0.0
        %1142 = vmatprep.subr.mxu0 0.0
        %1143 = vmatpush1.msra.mxu0 0.0
        %1144 = vmatprep.subr.mxu0 0.0
        %1145 = vmatpush1.msra.mxu0 0.0
        %1146 = vmatprep.subr.mxu0 0.0
        %1147 = vmatpush1.msra.mxu0 0.0
        %1148 = vmatprep.subr.mxu0 0.0
        %1149 = vmatpush1.msra.mxu0 0.0
        %1150 = vmatprep.subr.mxu0 0.0
        %1151 = vmatpush1.msra.mxu0 0.0
        %1152 = vmatprep.subr.mxu0 0.0
        %1153 = vmatpush1.msra.mxu0 0.0
        %1154 = vmatprep.subr.mxu0 0.0
        %1155 = vmatpush1.msra.mxu0 0.0
        %1156 = vmatprep.subr.mxu0 0.0
        %1157 = vmatpush1.msra.mxu0 0.0
        %1158 = vmatprep.subr.mxu0 0.0
        %1159 = vmatpush1.msra.mxu0 0.0
        %1160 = vmatprep.subr.mxu0 0.0
        %1161 = vmatpush1.msra.mxu0 0.0
        %1162 = vmatprep.subr.mxu0 0.0
        %1163 = vmatpush1.msra.mxu0 0.0
        %1164 = vmatprep.subr.mxu0 0.0
        %1165 = vmatpush1.msra.mxu0 0.0
        %1166 = vmatprep.subr.mxu0 0.0
        %1167 = vmatpush1.msra.mxu0 0.0
        %1168 = vmatprep.subr.mxu0 0.0
        %1169 = vmatpush1.msra.mxu0 0.0
        %1170 = vmatprep.subr.mxu0 0.0
        %1171 = vmatpush1.msra.mxu0 0.0
        %1172 = vmatprep.subr.mxu0 0.0
        %1173 = vmatpush1.msra.mxu0 0.0
        %1174 = vmatprep.subr.mxu0 0.0
        %1175 = vmatpush1.msra.mxu0 0.0
        %1176 = vmatprep.subr.mxu0 0.0
        %1177 = vmatpush1.msra.mxu0 0.0
        %1178 = vmatprep.subr.mxu0 0.0
        %1179 = vmatpush1.msra.mxu0 0.0
        %1180 = vmatprep.subr.mxu0 0.0
        %1181 = vmatpush1.msra.mxu0 0.0
        %1182 = vmatprep.subr.mxu0 0.0
        %1183 = vmatpush1.msra.mxu0 0.0
        %1184 = vmatprep.subr.mxu0 0.0
        %1185 = vmatpush1.msra.mxu0 0.0
        %1186 = vmatprep.subr.mxu0 0.0
        %1187 = vmatpush1.msra.mxu0 0.0
        %1188 = vmatprep.subr.mxu0 0.0
        %1189 = vmatpush1.msra.mxu0 0.0
        %1190 = vmatprep.mubr.f32.mxu0 0.0
        %1191 = vmatmul.mubr.f32.gmra.mrb[0].mxu0 %v848
        %v1192 = vpop.f32.mrb[0].mxu0
        %v1193 = vadd.f32 %v829, %v1192
        %v1194 = vpop.f32.mrb[0].mxu0
        %v1195 = vadd.f32 %v829, %v1194
        %1196 = vmatprep.mubr.f32.mxu0 0.0
        %1197 = vmatmul.mubr.f32.gmra.mrb[0].mxu0 %v851
        %v1198 = vpop.f32.mrb[0].mxu0
        %v1199 = vadd.f32 %v834, %v1198
        %v1200 = vpop.f32.mrb[0].mxu0
        %v1201 = vadd.f32 %v834, %v1200
        %1202 = vmatprep.mubr.f32.mxu0 0.0
        %1203 = vmatmul.mubr.f32.gmra.mrb[0].mxu0 %v854
        %v1204 = vpop.f32.mrb[0].mxu0
        %v1205 = vadd.f32 %v839, %v1204
        %v1206 = vpop.f32.mrb[0].mxu0
        %v1207 = vadd.f32 %v839, %v1206
        %1208 = vmatprep.mubr.f32.mxu0 0.0
        %1209 = vmatmul.mubr.f32.gmra.mrb[0].mxu0 %v857
        %v1210 = vpop.f32.mrb[0].mxu0
        %v1211 = vadd.f32 %v844, %v1210
        %v1212 = vpop.f32.mrb[0].mxu0
        %v1213 = vadd.f32 %v844, %v1212
        %1214 = vdwg.mxu0
        %1215 = vmatprep.subr.mxu0 %v763
        %1216 = vmatpush1.msra.mxu0 %v762
        %1217 = vmatprep.subr.mxu0 %v779
        %1218 = vmatpush1.msra.mxu0 %v778
        %1219 = vmatprep.subr.mxu0 %v795
        %1220 = vmatpush1.msra.mxu0 %v794
        %1221 = vmatprep.subr.mxu0 %v811
        %1222 = vmatpush1.msra.mxu0 %v810
        %1223 = vmatprep.subr.mxu0 0.0
        %1224 = vmatpush1.msra.mxu0 0.0
        %1225 = vmatprep.subr.mxu0 0.0
        %1226 = vmatpush1.msra.mxu0 0.0
        %1227 = vmatprep.subr.mxu0 0.0
        %1228 = vmatpush1.msra.mxu0 0.0
        %1229 = vmatprep.subr.mxu0 0.0
        %1230 = vmatpush1.msra.mxu0 0.0
        %1231 = vmatprep.subr.mxu0 0.0
        %1232 = vmatpush1.msra.mxu0 0.0
        %1233 = vmatprep.subr.mxu0 0.0
        %1234 = vmatpush1.msra.mxu0 0.0
        %1235 = vmatprep.subr.mxu0 0.0
        %1236 = vmatpush1.msra.mxu0 0.0
        %1237 = vmatprep.subr.mxu0 0.0
        %1238 = vmatpush1.msra.mxu0 0.0
        %1239 = vmatprep.subr.mxu0 0.0
        %1240 = vmatpush1.msra.mxu0 0.0
        %1241 = vmatprep.subr.mxu0 0.0
        %1242 = vmatpush1.msra.mxu0 0.0
        %1243 = vmatprep.subr.mxu0 0.0
        %1244 = vmatpush1.msra.mxu0 0.0
        %1245 = vmatprep.subr.mxu0 0.0
        %1246 = vmatpush1.msra.mxu0 0.0
        %1247 = vmatprep.subr.mxu0 0.0
        %1248 = vmatpush1.msra.mxu0 0.0
        %1249 = vmatprep.subr.mxu0 0.0
        %1250 = vmatpush1.msra.mxu0 0.0
        %1251 = vmatprep.subr.mxu0 0.0
        %1252 = vmatpush1.msra.mxu0 0.0
        %1253 = vmatprep.subr.mxu0 0.0
        %1254 = vmatpush1.msra.mxu0 0.0
        %1255 = vmatprep.subr.mxu0 0.0
        %1256 = vmatpush1.msra.mxu0 0.0
        %1257 = vmatprep.subr.mxu0 0.0
        %1258 = vmatpush1.msra.mxu0 0.0
        %1259 = vmatprep.subr.mxu0 0.0
        %1260 = vmatpush1.msra.mxu0 0.0
        %1261 = vmatprep.subr.mxu0 0.0
        %1262 = vmatpush1.msra.mxu0 0.0
        %1263 = vmatprep.subr.mxu0 0.0
        %1264 = vmatpush1.msra.mxu0 0.0
        %1265 = vmatprep.subr.mxu0 0.0
        %1266 = vmatpush1.msra.mxu0 0.0
        %1267 = vmatprep.subr.mxu0 0.0
        %1268 = vmatpush1.msra.mxu0 0.0
        %1269 = vmatprep.subr.mxu0 0.0
        %1270 = vmatpush1.msra.mxu0 0.0
        %1271 = vmatprep.subr.mxu0 0.0
        %1272 = vmatpush1.msra.mxu0 0.0
        %1273 = vmatprep.subr.mxu0 0.0
        %1274 = vmatpush1.msra.mxu0 0.0
        %1275 = vmatprep.subr.mxu0 0.0
        %1276 = vmatpush1.msra.mxu0 0.0
        %1277 = vmatprep.subr.mxu0 0.0
        %1278 = vmatpush1.msra.mxu0 0.0
        %1279 = vmatprep.mubr.f32.mxu0 0.0
        %1280 = vmatmul.mubr.f32.gmra.mrb[0].mxu0 %v848
        %v1281 = vpop.f32.mrb[0].mxu0
        %v1282 = vadd.f32 %v829, %v1281
        %v1283 = vpop.f32.mrb[0].mxu0
        %v1284 = vadd.f32 %v829, %v1283
        %1285 = vmatprep.mubr.f32.mxu0 0.0
        %1286 = vmatmul.mubr.f32.gmra.mrb[0].mxu0 %v851
        %v1287 = vpop.f32.mrb[0].mxu0
        %v1288 = vadd.f32 %v834, %v1287
        %v1289 = vpop.f32.mrb[0].mxu0
        %v1290 = vadd.f32 %v834, %v1289
        %1291 = vmatprep.mubr.f32.mxu0 0.0
        %1292 = vmatmul.mubr.f32.gmra.mrb[0].mxu0 %v854
        %v1293 = vpop.f32.mrb[0].mxu0
        %v1294 = vadd.f32 %v839, %v1293
        %v1295 = vpop.f32.mrb[0].mxu0
        %v1296 = vadd.f32 %v839, %v1295
        %1297 = vmatprep.mubr.f32.mxu0 0.0
        %1298 = vmatmul.mubr.f32.gmra.mrb[0].mxu0 %v857
        %v1299 = vpop.f32.mrb[0].mxu0
        %v1300 = vadd.f32 %v844, %v1299
        %v1301 = vpop.f32.mrb[0].mxu0
        %v1302 = vadd.f32 %v844, %v1301
        %1303 = vdwg.mxu0
        %1304 = vmatprep.subr.mxu0 %v765
        %1305 = vmatpush1.msra.mxu0 %v764
        %1306 = vmatprep.subr.mxu0 %v781
        %1307 = vmatpush1.msra.mxu0 %v780
        %1308 = vmatprep.subr.mxu0 %v797
        %1309 = vmatpush1.msra.mxu0 %v796
        %1310 = vmatprep.subr.mxu0 %v813
        %1311 = vmatpush1.msra.mxu0 %v812
        %1312 = vmatprep.subr.mxu0 0.0
        %1313 = vmatpush1.msra.mxu0 0.0
        %1314 = vmatprep.subr.mxu0 0.0
        %1315 = vmatpush1.msra.mxu0 0.0
        %1316 = vmatprep.subr.mxu0 0.0
        %1317 = vmatpush1.msra.mxu0 0.0
        %1318 = vmatprep.subr.mxu0 0.0
        %1319 = vmatpush1.msra.mxu0 0.0
        %1320 = vmatprep.subr.mxu0 0.0
        %1321 = vmatpush1.msra.mxu0 0.0
        %1322 = vmatprep.subr.mxu0 0.0
        %1323 = vmatpush1.msra.mxu0 0.0
        %1324 = vmatprep.subr.mxu0 0.0
        %1325 = vmatpush1.msra.mxu0 0.0
        %1326 = vmatprep.subr.mxu0 0.0
        %1327 = vmatpush1.msra.mxu0 0.0
        %1328 = vmatprep.subr.mxu0 0.0
        %1329 = vmatpush1.msra.mxu0 0.0
        %1330 = vmatprep.subr.mxu0 0.0
        %1331 = vmatpush1.msra.mxu0 0.0
        %1332 = vmatprep.subr.mxu0 0.0
        %1333 = vmatpush1.msra.mxu0 0.0
        %1334 = vmatprep.subr.mxu0 0.0
        %1335 = vmatpush1.msra.mxu0 0.0
        %1336 = vmatprep.subr.mxu0 0.0
        %1337 = vmatpush1.msra.mxu0 0.0
        %1338 = vmatprep.subr.mxu0 0.0
        %1339 = vmatpush1.msra.mxu0 0.0
        %1340 = vmatprep.subr.mxu0 0.0
        %1341 = vmatpush1.msra.mxu0 0.0
        %1342 = vmatprep.subr.mxu0 0.0
        %1343 = vmatpush1.msra.mxu0 0.0
        %1344 = vmatprep.subr.mxu0 0.0
        %1345 = vmatpush1.msra.mxu0 0.0
        %1346 = vmatprep.subr.mxu0 0.0
        %1347 = vmatpush1.msra.mxu0 0.0
        %1348 = vmatprep.subr.mxu0 0.0
        %1349 = vmatpush1.msra.mxu0 0.0
        %1350 = vmatprep.subr.mxu0 0.0
        %1351 = vmatpush1.msra.mxu0 0.0
        %1352 = vmatprep.subr.mxu0 0.0
        %1353 = vmatpush1.msra.mxu0 0.0
        %1354 = vmatprep.subr.mxu0 0.0
        %1355 = vmatpush1.msra.mxu0 0.0
        %1356 = vmatprep.subr.mxu0 0.0
        %1357 = vmatpush1.msra.mxu0 0.0
        %1358 = vmatprep.subr.mxu0 0.0
        %1359 = vmatpush1.msra.mxu0 0.0
        %1360 = vmatprep.subr.mxu0 0.0
        %1361 = vmatpush1.msra.mxu0 0.0
        %1362 = vmatprep.subr.mxu0 0.0
        %1363 = vmatpush1.msra.mxu0 0.0
        %1364 = vmatprep.subr.mxu0 0.0
        %1365 = vmatpush1.msra.mxu0 0.0
        %1366 = vmatprep.subr.mxu0 0.0
        %1367 = vmatpush1.msra.mxu0 0.0
        %1368 = vmatprep.mubr.f32.mxu0 0.0
        %1369 = vmatmul.mubr.f32.gmra.mrb[0].mxu0 %v848
        %v1370 = vpop.f32.mrb[0].mxu0
        %v1371 = vadd.f32 %v829, %v1370
        %v1372 = vpop.f32.mrb[0].mxu0
        %v1373 = vadd.f32 %v829, %v1372
        %1374 = vmatprep.mubr.f32.mxu0 0.0
        %1375 = vmatmul.mubr.f32.gmra.mrb[0].mxu0 %v851
        %v1376 = vpop.f32.mrb[0].mxu0
        %v1377 = vadd.f32 %v834, %v1376
        %v1378 = vpop.f32.mrb[0].mxu0
        %v1379 = vadd.f32 %v834, %v1378
        %1380 = vmatprep.mubr.f32.mxu0 0.0
        %1381 = vmatmul.mubr.f32.gmra.mrb[0].mxu0 %v854
        %v1382 = vpop.f32.mrb[0].mxu0
        %v1383 = vadd.f32 %v839, %v1382
        %v1384 = vpop.f32.mrb[0].mxu0
        %v1385 = vadd.f32 %v839, %v1384
        %1386 = vmatprep.mubr.f32.mxu0 0.0
        %1387 = vmatmul.mubr.f32.gmra.mrb[0].mxu0 %v857
        %v1388 = vpop.f32.mrb[0].mxu0
        %v1389 = vadd.f32 %v844, %v1388
        %v1390 = vpop.f32.mrb[0].mxu0
        %v1391 = vadd.f32 %v844, %v1390
        %1392 = vdwg.mxu0
        %1393 = vmatprep.subr.mxu0 %v767
        %1394 = vmatpush1.msra.mxu0 %v766
        %1395 = vmatprep.subr.mxu0 %v783
        %1396 = vmatpush1.msra.mxu0 %v782
        %1397 = vmatprep.subr.mxu0 %v799
        %1398 = vmatpush1.msra.mxu0 %v798
        %1399 = vmatprep.subr.mxu0 %v815
        %1400 = vmatpush1.msra.mxu0 %v814
        %1401 = vmatprep.subr.mxu0 0.0
        %1402 = vmatpush1.msra.mxu0 0.0
        %1403 = vmatprep.subr.mxu0 0.0
        %1404 = vmatpush1.msra.mxu0 0.0
        %1405 = vmatprep.subr.mxu0 0.0
        %1406 = vmatpush1.msra.mxu0 0.0
        %1407 = vmatprep.subr.mxu0 0.0
        %1408 = vmatpush1.msra.mxu0 0.0
        %1409 = vmatprep.subr.mxu0 0.0
        %1410 = vmatpush1.msra.mxu0 0.0
        %1411 = vmatprep.subr.mxu0 0.0
        %1412 = vmatpush1.msra.mxu0 0.0
        %1413 = vmatprep.subr.mxu0 0.0
        %1414 = vmatpush1.msra.mxu0 0.0
        %1415 = vmatprep.subr.mxu0 0.0
        %1416 = vmatpush1.msra.mxu0 0.0
        %1417 = vmatprep.subr.mxu0 0.0
        %1418 = vmatpush1.msra.mxu0 0.0
        %1419 = vmatprep.subr.mxu0 0.0
        %1420 = vmatpush1.msra.mxu0 0.0
        %1421 = vmatprep.subr.mxu0 0.0
        %1422 = vmatpush1.msra.mxu0 0.0
        %1423 = vmatprep.subr.mxu0 0.0
        %1424 = vmatpush1.msra.mxu0 0.0
        %1425 = vmatprep.subr.mxu0 0.0
        %1426 = vmatpush1.msra.mxu0 0.0
        %1427 = vmatprep.subr.mxu0 0.0
        %1428 = vmatpush1.msra.mxu0 0.0
        %1429 = vmatprep.subr.mxu0 0.0
        %1430 = vmatpush1.msra.mxu0 0.0
        %1431 = vmatprep.subr.mxu0 0.0
        %1432 = vmatpush1.msra.mxu0 0.0
        %1433 = vmatprep.subr.mxu0 0.0
        %1434 = vmatpush1.msra.mxu0 0.0
        %1435 = vmatprep.subr.mxu0 0.0
        %1436 = vmatpush1.msra.mxu0 0.0
        %1437 = vmatprep.subr.mxu0 0.0
        %1438 = vmatpush1.msra.mxu0 0.0
        %1439 = vmatprep.subr.mxu0 0.0
        %1440 = vmatpush1.msra.mxu0 0.0
        %1441 = vmatprep.subr.mxu0 0.0
        %1442 = vmatpush1.msra.mxu0 0.0
        %1443 = vmatprep.subr.mxu0 0.0
        %1444 = vmatpush1.msra.mxu0 0.0
        %1445 = vmatprep.subr.mxu0 0.0
        %1446 = vmatpush1.msra.mxu0 0.0
        %1447 = vmatprep.subr.mxu0 0.0
        %1448 = vmatpush1.msra.mxu0 0.0
        %1449 = vmatprep.subr.mxu0 0.0
        %1450 = vmatpush1.msra.mxu0 0.0
        %1451 = vmatprep.subr.mxu0 0.0
        %1452 = vmatpush1.msra.mxu0 0.0
        %1453 = vmatprep.subr.mxu0 0.0
        %1454 = vmatpush1.msra.mxu0 0.0
        %1455 = vmatprep.subr.mxu0 0.0
        %1456 = vmatpush1.msra.mxu0 0.0
        %1457 = vmatprep.mubr.f32.mxu0 0.0
        %1458 = vmatmul.mubr.f32.gmra.mrb[0].mxu0 %v848
        %v1459 = vpop.f32.mrb[0].mxu0
        %v1460 = vadd.f32 %v829, %v1459
        %v1461 = vpop.f32.mrb[0].mxu0
        %v1462 = vadd.f32 %v829, %v1461
        %1463 = vmatprep.mubr.f32.mxu0 0.0
        %1464 = vmatmul.mubr.f32.gmra.mrb[0].mxu0 %v851
        %v1465 = vpop.f32.mrb[0].mxu0
        %v1466 = vadd.f32 %v834, %v1465
        %v1467 = vpop.f32.mrb[0].mxu0
        %v1468 = vadd.f32 %v834, %v1467
        %1469 = vmatprep.mubr.f32.mxu0 0.0
        %1470 = vmatmul.mubr.f32.gmra.mrb[0].mxu0 %v854
        %v1471 = vpop.f32.mrb[0].mxu0
        %v1472 = vadd.f32 %v839, %v1471
        %v1473 = vpop.f32.mrb[0].mxu0
        %v1474 = vadd.f32 %v839, %v1473
        %1475 = vmatprep.mubr.f32.mxu0 0.0
        %1476 = vmatmul.mubr.f32.gmra.mrb[0].mxu0 %v857
        %v1477 = vpop.f32.mrb[0].mxu0
        %v1478 = vadd.f32 %v844, %v1477
        %v1479 = vpop.f32.mrb[0].mxu0
        %v1480 = vadd.f32 %v844, %v1479
        %1481 = vdwg.mxu0
        %1482 = vmatprep.subr.mxu0 %v769
        %1483 = vmatpush1.msra.mxu0 %v768
        %1484 = vmatprep.subr.mxu0 %v785
        %1485 = vmatpush1.msra.mxu0 %v784
        %1486 = vmatprep.subr.mxu0 %v801
        %1487 = vmatpush1.msra.mxu0 %v800
        %1488 = vmatprep.subr.mxu0 %v817
        %1489 = vmatpush1.msra.mxu0 %v816
        %1490 = vmatprep.subr.mxu0 0.0
        %1491 = vmatpush1.msra.mxu0 0.0
        %1492 = vmatprep.subr.mxu0 0.0
        %1493 = vmatpush1.msra.mxu0 0.0
        %1494 = vmatprep.subr.mxu0 0.0
        %1495 = vmatpush1.msra.mxu0 0.0
        %1496 = vmatprep.subr.mxu0 0.0
        %1497 = vmatpush1.msra.mxu0 0.0
        %1498 = vmatprep.subr.mxu0 0.0
        %1499 = vmatpush1.msra.mxu0 0.0
        %1500 = vmatprep.subr.mxu0 0.0
        %1501 = vmatpush1.msra.mxu0 0.0
        %1502 = vmatprep.subr.mxu0 0.0
        %1503 = vmatpush1.msra.mxu0 0.0
        %1504 = vmatprep.subr.mxu0 0.0
        %1505 = vmatpush1.msra.mxu0 0.0
        %1506 = vmatprep.subr.mxu0 0.0
        %1507 = vmatpush1.msra.mxu0 0.0
        %1508 = vmatprep.subr.mxu0 0.0
        %1509 = vmatpush1.msra.mxu0 0.0
        %1510 = vmatprep.subr.mxu0 0.0
        %1511 = vmatpush1.msra.mxu0 0.0
        %1512 = vmatprep.subr.mxu0 0.0
        %1513 = vmatpush1.msra.mxu0 0.0
        %1514 = vmatprep.subr.mxu0 0.0
        %1515 = vmatpush1.msra.mxu0 0.0
        %1516 = vmatprep.subr.mxu0 0.0
        %1517 = vmatpush1.msra.mxu0 0.0
        %1518 = vmatprep.subr.mxu0 0.0
        %1519 = vmatpush1.msra.mxu0 0.0
        %1520 = vmatprep.subr.mxu0 0.0
        %1521 = vmatpush1.msra.mxu0 0.0
        %1522 = vmatprep.subr.mxu0 0.0
        %1523 = vmatpush1.msra.mxu0 0.0
        %1524 = vmatprep.subr.mxu0 0.0
        %1525 = vmatpush1.msra.mxu0 0.0
        %1526 = vmatprep.subr.mxu0 0.0
        %1527 = vmatpush1.msra.mxu0 0.0
        %1528 = vmatprep.subr.mxu0 0.0
        %1529 = vmatpush1.msra.mxu0 0.0
        %1530 = vmatprep.subr.mxu0 0.0
        %1531 = vmatpush1.msra.mxu0 0.0
        %1532 = vmatprep.subr.mxu0 0.0
        %1533 = vmatpush1.msra.mxu0 0.0
        %1534 = vmatprep.subr.mxu0 0.0
        %1535 = vmatpush1.msra.mxu0 0.0
        %1536 = vmatprep.subr.mxu0 0.0
        %1537 = vmatpush1.msra.mxu0 0.0
        %1538 = vmatprep.subr.mxu0 0.0
        %1539 = vmatpush1.msra.mxu0 0.0
        %1540 = vmatprep.subr.mxu0 0.0
        %1541 = vmatpush1.msra.mxu0 0.0
        %1542 = vmatprep.subr.mxu0 0.0
        %1543 = vmatpush1.msra.mxu0 0.0
        %1544 = vmatprep.subr.mxu0 0.0
        %1545 = vmatpush1.msra.mxu0 0.0
        %1546 = vmatprep.mubr.f32.mxu0 0.0
        %1547 = vmatmul.mubr.f32.gmra.mrb[0].mxu0 %v848
        %v1548 = vpop.f32.mrb[0].mxu0
        %v1549 = vadd.f32 %v829, %v1548
        %v1550 = vpop.f32.mrb[0].mxu0
        %v1551 = vadd.f32 %v829, %v1550
        %1552 = vmatprep.mubr.f32.mxu0 0.0
        %1553 = vmatmul.mubr.f32.gmra.mrb[0].mxu0 %v851
        %v1554 = vpop.f32.mrb[0].mxu0
        %v1555 = vadd.f32 %v834, %v1554
        %v1556 = vpop.f32.mrb[0].mxu0
        %v1557 = vadd.f32 %v834, %v1556
        %1558 = vmatprep.mubr.f32.mxu0 0.0
        %1559 = vmatmul.mubr.f32.gmra.mrb[0].mxu0 %v854
        %v1560 = vpop.f32.mrb[0].mxu0
        %v1561 = vadd.f32 %v839, %v1560
        %v1562 = vpop.f32.mrb[0].mxu0
        %v1563 = vadd.f32 %v839, %v1562
        %1564 = vmatprep.mubr.f32.mxu0 0.0
        %1565 = vmatmul.mubr.f32.gmra.mrb[0].mxu0 %v857
        %v1566 = vpop.f32.mrb[0].mxu0
        %v1567 = vadd.f32 %v844, %v1566
        %v1568 = vpop.f32.mrb[0].mxu0
        %v1569 = vadd.f32 %v844, %v1568
        %1570 = vdwg.mxu0
        %1571 = vst [vmem:[%s206] sm:$0xff] %v926
        %1572 = vst [vmem:[%s206 + $0x8] sm:$0xff] %v928
        %1573 = vst [vmem:[%s206 + $0x10] sm:$0xff] %v1015
        %1574 = vst [vmem:[%s206 + $0x18] sm:$0xff] %v1017
        %1575 = vst [vmem:[%s206 + $0x20] sm:$0xff] %v1104
        %1576 = vst [vmem:[%s206 + $0x28] sm:$0xff] %v1106
        %1577 = vst [vmem:[%s206 + $0x30] sm:$0xff] %v1193
        %1578 = vst [vmem:[%s206 + $0x38] sm:$0xff] %v1195
        %1579 = vst [vmem:[%s206 + $0x40] sm:$0xff] %v1282
        %1580 = vst [vmem:[%s206 + $0x48] sm:$0xff] %v1284
        %1581 = vst [vmem:[%s206 + $0x50] sm:$0xff] %v1371
        %1582 = vst [vmem:[%s206 + $0x58] sm:$0xff] %v1373
        %1583 = vst [vmem:[%s206 + $0x60] sm:$0xff] %v1460
        %1584 = vst [vmem:[%s206 + $0x68] sm:$0xff] %v1462
        %1585 = vst [vmem:[%s206 + $0x70] sm:$0xff] %v1549
        %1586 = vst [vmem:[%s206 + $0x78] sm:$0xff] %v1551
        %1587 = vst [vmem:[%s206 + $0x80] sm:$0xff] %v932
        %1588 = vst [vmem:[%s206 + $0x88] sm:$0xff] %v934
        %1589 = vst [vmem:[%s206 + $0x90] sm:$0xff] %v1021
        %1590 = vst [vmem:[%s206 + $0x98] sm:$0xff] %v1023
        %1591 = vst [vmem:[%s206 + $0xa0] sm:$0xff] %v1110
        %1592 = vst [vmem:[%s206 + $0xa8] sm:$0xff] %v1112
        %1593 = vst [vmem:[%s206 + $0xb0] sm:$0xff] %v1199
        %1594 = vst [vmem:[%s206 + $0xb8] sm:$0xff] %v1201
        %1595 = vst [vmem:[%s206 + $0xc0] sm:$0xff] %v1288
        %1596 = vst [vmem:[%s206 + $0xc8] sm:$0xff] %v1290
        %1597 = vst [vmem:[%s206 + $0xd0] sm:$0xff] %v1377
        %1598 = vst [vmem:[%s206 + $0xd8] sm:$0xff] %v1379
        %1599 = vst [vmem:[%s206 + $0xe0] sm:$0xff] %v1466
        %1600 = vst [vmem:[%s206 + $0xe8] sm:$0xff] %v1468
        %1601 = vst [vmem:[%s206 + $0xf0] sm:$0xff] %v1555
        %1602 = vst [vmem:[%s206 + $0xf8] sm:$0xff] %v1557
        %1603 = vst [vmem:[%s206 + $0x100] sm:$0xff] %v938
        %1604 = vst [vmem:[%s206 + $0x108] sm:$0xff] %v940
        %1605 = vst [vmem:[%s206 + $0x110] sm:$0xff] %v1027
        %1606 = vst [vmem:[%s206 + $0x118] sm:$0xff] %v1029
        %1607 = vst [vmem:[%s206 + $0x120] sm:$0xff] %v1116
        %1608 = vst [vmem:[%s206 + $0x128] sm:$0xff] %v1118
        %1609 = vst [vmem:[%s206 + $0x130] sm:$0xff] %v1205
        %1610 = vst [vmem:[%s206 + $0x138] sm:$0xff] %v1207
        %1611 = vst [vmem:[%s206 + $0x140] sm:$0xff] %v1294
        %1612 = vst [vmem:[%s206 + $0x148] sm:$0xff] %v1296
        %1613 = vst [vmem:[%s206 + $0x150] sm:$0xff] %v1383
        %1614 = vst [vmem:[%s206 + $0x158] sm:$0xff] %v1385
        %1615 = vst [vmem:[%s206 + $0x160] sm:$0xff] %v1472
        %1616 = vst [vmem:[%s206 + $0x168] sm:$0xff] %v1474
        %1617 = vst [vmem:[%s206 + $0x170] sm:$0xff] %v1561
        %1618 = vst [vmem:[%s206 + $0x178] sm:$0xff] %v1563
        %1619 = vst [vmem:[%s206 + $0x180] sm:$0xff] %v944
        %1620 = vst [vmem:[%s206 + $0x188] sm:$0xff] %v946
        %1621 = vst [vmem:[%s206 + $0x190] sm:$0xff] %v1033
        %1622 = vst [vmem:[%s206 + $0x198] sm:$0xff] %v1035
        %1623 = vst [vmem:[%s206 + $0x1a0] sm:$0xff] %v1122
        %1624 = vst [vmem:[%s206 + $0x1a8] sm:$0xff] %v1124
        %1625 = vst [vmem:[%s206 + $0x1b0] sm:$0xff] %v1211
        %1626 = vst [vmem:[%s206 + $0x1b8] sm:$0xff] %v1213
        %1627 = vst [vmem:[%s206 + $0x1c0] sm:$0xff] %v1300
        %1628 = vst [vmem:[%s206 + $0x1c8] sm:$0xff] %v1302
        %1629 = vst [vmem:[%s206 + $0x1d0] sm:$0xff] %v1389
        %1630 = vst [vmem:[%s206 + $0x1d8] sm:$0xff] %v1391
        %1631 = vst [vmem:[%s206 + $0x1e0] sm:$0xff] %v1478
        %1632 = vst [vmem:[%s206 + $0x1e8] sm:$0xff] %v1480
        %1633 = vst [vmem:[%s206 + $0x1f0] sm:$0xff] %v1567
        %1634 = vst [vmem:[%s206 + $0x1f8] sm:$0xff] %v1569
        %s1635 = sand.u32 %s112, 1
        %s1636 = scalar_lea.sflag [#allocation4], %s1635
        %s1637 = sand.u32 %s112, 1
        %s1638 = smul.addr %s1637, 512
        %s1639 = scalar_lea.vmem [#allocation5], %s1638
        // Predicated region
        $region37: #{tpu_custom_call.1} parent=31 // pred_check
          %p1640 = pneg %p122
        $region38: #{tpu_custom_call.1} parent=31 // pred_check_branch
          %1642 = sbr.rel (%p1640) target = $region40
        $region39: #{tpu_custom_call.1} parent=31 // pred_region
          %s1643 = smul.u32 16, %s25
          %s1645 = ssub.s32 8192, 8192
          %1646 = vsyncadd %s1636, %s1645
          %s1647 = smul.addr %s24, 128
          %s1648 = sadd.s32 %s1643, %s1647
          %s1649 = smul.addr %s1648, 128
          %s1650 = scalar_lea.hbm %s3, %s1649
          %s1651 = sshll.u32 %s1639, 4
          %s1652 = int_to_ptr.vmem [resolvable:$true] %s1651
          %1657 = dma.vmem_to_hbm [thread:$0]  %s1652, 8192, %s1650, %s1636, 2048, 4096, 128
        $region40: #{tpu_custom_call.1} parent=31 // pred_fallthru
          _
      $region32: #{tpu_custom_call.1} parent=5 // pred_fallthru
        _
      %p1658 = scmp.le.s32.totalorder 2, %s15
      // Predicated region
      $region41: #{tpu_custom_call.1} parent=5 // pred_check
        %p1659 = pneg %p1658
      $region42: #{tpu_custom_call.1} parent=5 // pred_check_branch
        %1661 = sbr.rel (%p1659) target = $region44
      $region43: #{tpu_custom_call.1} parent=5 // pred_region
        %s1662 = ssub.s32 %s15, 2
        // Predicated region
        $region45: #{tpu_custom_call.1} parent=43 // pred_check
          %p1663 = pneg %p128
        $region46: #{tpu_custom_call.1} parent=43 // pred_check_branch
          %1665 = sbr.rel (%p1663) target = $region48
        $region47: #{tpu_custom_call.1} parent=43 // pred_region
          %s1666 = sand.u32 %s113, 1
          %s1667 = scalar_lea.sflag [#allocation4], %s1666
          %s1668 = sand.u32 %s113, 1
          %s1669 = smul.addr %s1668, 512
          %s1670 = scalar_lea.vmem [#allocation5], %s1669
          %1671 = dma.done %s1667, 8192
        $region48: #{tpu_custom_call.1} parent=43 // pred_fallthru
          _
      $region44: #{tpu_custom_call.1} parent=5 // pred_fallthru
        _
    $region6: #{tpu_custom_call.1} parent=1 // loop_footer
      %s19 = sadd.s32 1, %s15
    $region7: #{tpu_custom_call.1} parent=1 // loop_footer_branch
      %14 = sbr.rel target = $region3
    $region8: #{tpu_custom_call.1} parent=1 // loop_exit
      _
    %1672 = vsyncpa [#allocation3], 1
    %s1673 = scalar_lea.sflag [#allocation3], 1
    %1674 = vsyncpa %s1673, 1
    %1675 = vsyncpa [#allocation4], 1
    %s1676 = scalar_lea.sflag [#allocation4], 1
    %1677 = vsyncpa %s1676, 1

</llo_original>
